<compile_context>
chip_gen: v7x
topology: tpu7x:2x2x1
jax: 0.10.0
libtpu: 0.0.40
codegen_flags: <defaults>
</compile_context>

<pallas_src>
import numpy as np
import jax
import jax.numpy as jnp
from jax.experimental import pallas as pl
from jax.experimental.pallas import tpu as pltpu


def odefunc_kernel(x_ref, bg_ref, a_ref, wt_ref, b_ref, out_ref):
    """One grid step == K graph blocks of TB nodes each (KT = K*TB rows).

    x_ref   : (2, KT, H)  f32   raw S and I node-feature slabs of these graphs
    bg_ref  : (KT, 2)     f32   beta | gamma per node
    a_ref   : (K, TB, TB) bf16  per-graph binary adjacency blocks
    wt_ref  : (H, H)      bf16  linear.weight.T
    b_ref   : (1, H)      f32   linear.bias
    out_ref : (4, KT, H)  f32   (dS, dI, dR, zeros)
    """
    k, tb, _ = a_ref.shape
    kt = k * tb
    h = wt_ref.shape[1]

    # Fused linear + sigmoid for S and I as ONE (2*KT, H) MXU matmul.  The
    # in-kernel bf16 cast replaces the old wrapper-side cast passes.  (The R
    # branch of the PyTorch forward is dead downstream and is dropped.)
    si = x_ref[...].reshape(2 * kt, h).astype(jnp.bfloat16)          # (2KT, H)
    y = jnp.dot(si, wt_ref[...], preferred_element_type=jnp.float32)
    y = y + b_ref[...]                                               # f32
    sig = pl.reciprocal(1.0 + jnp.exp(-y), approx=True)              # sigmoid
    sig = sig.reshape(2, kt, h)
    S = sig[0]                                                       # (KT, H)
    I = sig[1]                                                       # (KT, H)

    # AI = scatter_add over this step's adjacency nonzeros == blockdiag(A_g) @ I
    # (adjacency values are ignored in the PyTorch code; pattern only), done as
    # a batched per-graph matmul over the K graphs of this step.
    AI = jnp.einsum("gij,gjd->gid", a_ref[...],
                    I.astype(jnp.bfloat16).reshape(k, tb, h),
                    preferred_element_type=jnp.float32).reshape(kt, h)

    beta = bg_ref[:, 0:1]                                            # (KT, 1)
    gamma = bg_ref[:, 1:2]                                           # (KT, 1)
    dS = -beta * (AI * S)
    gI = gamma * I
    out_ref[0] = dS
    out_ref[1] = -dS - gI          # dI
    out_ref[2] = gI                # dR
    out_ref[3] = jnp.zeros_like(gI)  # zero slab written in-kernel (pipelined)


def prepare_params(weight, bias, a_blocks):
    """Hoisted per-solve preprocessing: do this ONCE outside the ODE loop.

    weight: (H, H) PyTorch-style (out, in); bias: (H,);
    a_blocks: (G, TB, TB) binary per-graph diagonal blocks.
    """
    weight = jnp.asarray(weight, jnp.float32)
    H = weight.shape[0]
    wt_bf16 = weight.T.astype(jnp.bfloat16)            # y = v @ W.T
    bias_row = jnp.asarray(bias, jnp.float32).reshape(1, H)
    a_bf16 = jnp.asarray(a_blocks).astype(jnp.bfloat16)  # binary -> exact bf16
    return wt_bf16, bias_row, a_bf16


def odefunc_forward(x, wt_bf16, bias_row, a_bf16, *, graphs_per_step=2):
    """x: (4, N, H) f32.  Returns (4, N, H) = (dS, dI, dR, zeros), matching
    the PyTorch forward.  `graphs_per_step` (K) batches graphs per grid step."""
    x = jnp.asarray(x, jnp.float32)
    _, N, H = x.shape
    G, TB, _ = a_bf16.shape
    K = graphs_per_step
    assert G * TB == N, "graph blocks must tile the node axis exactly"
    assert G % K == 0, "graphs_per_step must divide the number of graphs"
    assert TB % 16 == 0, "per-graph block must be a multiple of 16 (bf16 rows)"
    assert H % 128 == 0, "hidden dim must be lane-dense (multiple of 128)"
    KT = K * TB

    # beta/gamma merged into one small (N, 2) input (one tiny DMA per step).
    bg = x[3, :, 0:2]

    grid_spec = pltpu.PrefetchScalarGridSpec(
        num_scalar_prefetch=0,
        grid=(G // K,),
        in_specs=[
            pl.BlockSpec((2, KT, H), lambda g: (0, g, 0)),    # raw S|I rows (f32)
            pl.BlockSpec((KT, 2), lambda g: (g, 0)),          # beta | gamma
            pl.BlockSpec((K, TB, TB), lambda g: (g, 0, 0)),   # adjacency blocks
            pl.BlockSpec((H, H), lambda g: (0, 0)),           # weight.T (bf16)
            pl.BlockSpec((1, H), lambda g: (0, 0)),           # bias
        ],
        out_specs=pl.BlockSpec((4, KT, H), lambda g: (0, g, 0)),
    )

    return pl.pallas_call(
        odefunc_kernel,
        out_shape=jax.ShapeDtypeStruct((4, N, H), jnp.float32),
        grid_spec=grid_spec,
        compiler_params=pltpu.CompilerParams(
            dimension_semantics=("parallel",),      # v7x: split graphs over TCs
            vmem_limit_bytes=32 * 1024 * 1024),     # ~2 MB/step working set
    )(x, bg, a_bf16, wt_bf16, bias_row)


def build_block_adjacency(graph_idx, A_list, block_rows):
    """Host-side equivalent of the scipy.sparse.block_diag construction,
    returned as stacked per-graph diagonal blocks (pattern only, matching the
    scatter_add over COO nonzeros)."""
    graph_idx = np.asarray(graph_idx)
    blocks = []
    for gi in graph_idx[graph_idx != 0]:
        blk = np.asarray(A_list[int(gi) - 1])
        # TODO(synk): ragged per-graph node counts would need host-side padding
        # or scalar-prefetch row offsets; this version assumes uniform blocks.
        assert blk.shape[0] == block_rows
        blocks.append((blk != 0).astype(np.float32))
    return np.stack(blocks)                         # (G, TB, TB)


def ref_forward(x, weight, bias, a_blocks):
    """Pure-numpy reference matching the PyTorch forward (f32, exact sigmoid)."""
    x = np.asarray(x, np.float32)
    W = np.asarray(weight, np.float32)
    b = np.asarray(bias, np.float32)
    a_blocks = np.asarray(a_blocks, np.float32)
    G, TB, _ = a_blocks.shape
    N, H = x.shape[1], x.shape[2]
    amask = np.zeros((N, N), np.float32)
    for g in range(G):
        amask[g * TB:(g + 1) * TB, g * TB:(g + 1) * TB] = a_blocks[g]
    beta = x[3, :, 0:1]
    gamma = x[3, :, 1:2]
    sir = x[:3].reshape(-1, H) @ W.T + b
    sir = 1.0 / (1.0 + np.exp(-sir))
    sir = sir.reshape(3, N, H)
    S, I = sir[0], sir[1]
    AI = amask @ I
    dS = -beta * (AI * S)
    dI = -dS - gamma * I
    dR = gamma * I
    return np.stack([dS, dI, dR, np.zeros_like(dS)])


def _ring_adj(n, self_loops=False):
    A = np.zeros((n, n), dtype=np.float32)
    for i in range(n):
        A[i, (i + 1) % n] = 1.0
        A[i, (i - 1) % n] = 1.0
    if self_loops:
        A += np.eye(n, dtype=np.float32)
    return A


if __name__ == "__main__":
    # Four graphs of 128 nodes each, hidden = 128, two graphs per grid step
    # -> grid length 2 (even, >= 2: both v7x TensorCores get work).
    G, TB, H, K = 4, 128, 128, 2
    N = G * TB

    A_list = [_ring_adj(TB), _ring_adj(TB, self_loops=True),
              _ring_adj(TB), _ring_adj(TB, self_loops=True)]

    key = jax.random.PRNGKey(0)
    k_sir, k_beta, k_gamma, k_w, k_b = jax.random.split(key, 5)

    # Default nn.Linear init (uniform +-1/sqrt(H)); keeps pre-sigmoid
    # activations O(1) so bf16 MXU precision stays well within tolerance.
    bound = 1.0 / np.sqrt(H)
    weight = jax.random.uniform(k_w, (H, H), jnp.float32, -bound, bound)
    bias = jax.random.uniform(k_b, (H,), jnp.float32, -bound, bound)

    # Inputs in the original (4, N, H) layout.
    sir0 = jax.random.normal(k_sir, (3, N, H), jnp.float32)
    beta = jax.random.uniform(k_beta, (N,), jnp.float32, 0.1, 0.5)
    gamma = jax.random.uniform(k_gamma, (N,), jnp.float32, 0.05, 0.2)
    graph_idx = np.zeros((N,), np.float32)
    graph_idx[:G] = np.arange(1, G + 1, dtype=np.float32)   # select graphs 1..G

    row3 = jnp.zeros((N, H), jnp.float32)
    row3 = row3.at[:, 0].set(beta).at[:, 1].set(gamma)
    row3 = row3.at[:, 2].set(jnp.asarray(graph_idx))
    x = jnp.concatenate([sir0, row3[None]], axis=0)          # (4, N, H)

    a_blocks = build_block_adjacency(graph_idx, A_list, TB)

    # Hoisted once per solve (the ODE RHS is called many times).
    wt_bf16, bias_row, a_bf16 = prepare_params(weight, bias, a_blocks)

    fwd = jax.jit(odefunc_forward, static_argnames=("graphs_per_step",))
    out = jax.block_until_ready(
        fwd(x, wt_bf16, bias_row, a_bf16, graphs_per_step=K))

    ref = ref_forward(x, weight, bias, a_blocks)
    # Tolerance accounts for bf16 MXU operands + approx-reciprocal sigmoid.
    np.testing.assert_allclose(np.asarray(out), ref, rtol=2e-2, atol=2e-2)

    print("KERNEL_OK")
</pallas_src>

<mosaic_0001>
module attributes {stable_mosaic.version = 11 : i64} {
  func.func @odefunc_kernel(%arg0: i32, %arg1: memref<2x256x128xf32, #tpu.memory_space<vmem>>, %arg2: memref<256x2xf32, #tpu.memory_space<vmem>>, %arg3: memref<2x128x128xbf16, #tpu.memory_space<vmem>>, %arg4: memref<128x128xbf16, #tpu.memory_space<vmem>>, %arg5: memref<1x128xf32, #tpu.memory_space<vmem>>, %arg6: memref<4x256x128xf32, #tpu.memory_space<vmem>>) attributes {dimension_semantics = [#tpu.dimension_semantics<parallel>], iteration_bounds = array<i64: 2>, scalar_prefetch = 0 : i64, scratch_operands = 0 : i64, tpu.core_type = #tpu.core_type<tc>, window_params = [{transform_indices = @transform_0, window_bounds = array<i64: 2, 256, 128>}, {transform_indices = @transform_1, window_bounds = array<i64: 256, 2>}, {transform_indices = @transform_2, window_bounds = array<i64: 2, 128, 128>}, {pipeline_mode = #tpu.pipeline_mode<synchronous>, transform_indices = @transform_3, window_bounds = array<i64: 128, 128>}, {pipeline_mode = #tpu.pipeline_mode<synchronous>, transform_indices = @transform_4, window_bounds = array<i64: 1, 128>}, {transform_indices = @transform_5, window_bounds = array<i64: 4, 256, 128>}]} {
    %c0 = arith.constant 0 : index
    %c0_0 = arith.constant 0 : index
    %c0_1 = arith.constant 0 : index
    %0 = vector.load %arg1[%c0, %c0_0, %c0_1] : memref<2x256x128xf32, #tpu.memory_space<vmem>>, vector<2x256x128xf32>
    %1 = vector.shape_cast %0 : vector<2x256x128xf32> to vector<512x128xf32>
    %2 = arith.truncf %1 : vector<512x128xf32> to vector<512x128xbf16>
    %c0_2 = arith.constant 0 : index
    %c0_3 = arith.constant 0 : index
    %3 = vector.load %arg4[%c0_2, %c0_3] : memref<128x128xbf16, #tpu.memory_space<vmem>>, vector<128x128xbf16>
    %cst = arith.constant dense<0.000000e+00> : vector<512x128xf32>
    %4 = tpu.matmul %2, %3, %cst {dimension_numbers = #tpu.dot_dimension_numbers<[1], [0], [0], [1], [0, 0, 1, 1], [], []>} : vector<512x128xbf16>, vector<128x128xbf16>, vector<512x128xf32> -> vector<512x128xf32>
    %c0_4 = arith.constant 0 : index
    %c0_5 = arith.constant 0 : index
    %5 = vector.load %arg5[%c0_4, %c0_5] : memref<1x128xf32, #tpu.memory_space<vmem>>, vector<1x128xf32>
    %6 = vector.broadcast %5 : vector<1x128xf32> to vector<512x128xf32>
    %7 = arith.addf %4, %6 : vector<512x128xf32>
    %cst_6 = arith.constant 0.000000e+00 : f32
    %8 = vector.broadcast %cst_6 : f32 to vector<512x128xf32>
    %9 = arith.subf %8, %7 : vector<512x128xf32>
    %10 = math.exp %9 : vector<512x128xf32>
    %cst_7 = arith.constant 1.000000e+00 : f32
    %11 = vector.broadcast %cst_7 : f32 to vector<512x128xf32>
    %12 = arith.addf %11, %10 : vector<512x128xf32>
    %13 = tpu.reciprocal %12 {approx = true} : vector<512x128xf32> -> vector<512x128xf32>
    %14 = vector.shape_cast %13 : vector<512x128xf32> to vector<2x256x128xf32>
    %15 = vector.extract_strided_slice %14 {offsets = [0, 0, 0], sizes = [1, 256, 128], strides = [1, 1, 1]} : vector<2x256x128xf32> to vector<1x256x128xf32>
    %16 = vector.shape_cast %15 : vector<1x256x128xf32> to vector<256x128xf32>
    %17 = vector.extract_strided_slice %14 {offsets = [1, 0, 0], sizes = [1, 256, 128], strides = [1, 1, 1]} : vector<2x256x128xf32> to vector<1x256x128xf32>
    %18 = vector.shape_cast %17 : vector<1x256x128xf32> to vector<256x128xf32>
    %c0_8 = arith.constant 0 : index
    %c0_9 = arith.constant 0 : index
    %c0_10 = arith.constant 0 : index
    %19 = vector.load %arg3[%c0_8, %c0_9, %c0_10] : memref<2x128x128xbf16, #tpu.memory_space<vmem>>, vector<2x128x128xbf16>
    %20 = arith.truncf %18 : vector<256x128xf32> to vector<256x128xbf16>
    %21 = vector.shape_cast %20 : vector<256x128xbf16> to vector<2x128x128xbf16>
    "tpu.trace_start"() <{level = 10 : i32, message = "gij,gjd->gid"}> : () -> ()
    %cst_11 = arith.constant dense<0.000000e+00> : vector<2x128x128xf32>
    %22 = tpu.matmul %19, %21, %cst_11 {dimension_numbers = #tpu.dot_dimension_numbers<[2], [1], [1], [2], [0, 0, 0, 1, 1, 2], [0], [0]>} : vector<2x128x128xbf16>, vector<2x128x128xbf16>, vector<2x128x128xf32> -> vector<2x128x128xf32>
    "tpu.trace_stop"() : () -> ()
    %23 = vector.shape_cast %22 : vector<2x128x128xf32> to vector<256x128xf32>
    %c0_12 = arith.constant 0 : index
    %c0_13 = arith.constant 0 : index
    %24 = vector.load %arg2[%c0_12, %c0_13] : memref<256x2xf32, #tpu.memory_space<vmem>>, vector<256x1xf32>
    %c0_14 = arith.constant 0 : index
    %c1 = arith.constant 1 : index
    %25 = vector.load %arg2[%c0_14, %c1] : memref<256x2xf32, #tpu.memory_space<vmem>>, vector<256x1xf32>
    %cst_15 = arith.constant 0.000000e+00 : f32
    %26 = vector.broadcast %cst_15 : f32 to vector<256x1xf32>
    %27 = arith.subf %26, %24 : vector<256x1xf32>
    %28 = arith.mulf %23, %16 : vector<256x128xf32>
    %29 = vector.broadcast %27 : vector<256x1xf32> to vector<256x128xf32>
    %30 = arith.mulf %29, %28 : vector<256x128xf32>
    %31 = vector.broadcast %25 : vector<256x1xf32> to vector<256x128xf32>
    %32 = arith.mulf %31, %18 : vector<256x128xf32>
    %c0_16 = arith.constant 0 : index
    %c0_17 = arith.constant 0 : index
    %c0_18 = arith.constant 0 : index
    %33 = vector.load %arg6[%c0_16, %c0_17, %c0_18] : memref<4x256x128xf32, #tpu.memory_space<vmem>>, vector<1x256x128xf32>
    %34 = vector.shape_cast %33 : vector<1x256x128xf32> to vector<256x128xf32>
    %35 = vector.shape_cast %30 : vector<256x128xf32> to vector<1x256x128xf32>
    tpu.vector_store %arg6[%c0_16, %c0_17, %c0_18], %35 {strides = array<i32>} : memref<4x256x128xf32, #tpu.memory_space<vmem>>, vector<1x256x128xf32>,
    %cst_19 = arith.constant 0.000000e+00 : f32
    %36 = vector.broadcast %cst_19 : f32 to vector<256x128xf32>
    %37 = arith.subf %36, %30 : vector<256x128xf32>
    %38 = arith.subf %37, %32 : vector<256x128xf32>
    %c1_20 = arith.constant 1 : index
    %c0_21 = arith.constant 0 : index
    %c0_22 = arith.constant 0 : index
    %39 = vector.load %arg6[%c1_20, %c0_21, %c0_22] : memref<4x256x128xf32, #tpu.memory_space<vmem>>, vector<1x256x128xf32>
    %40 = vector.shape_cast %39 : vector<1x256x128xf32> to vector<256x128xf32>
    %41 = vector.shape_cast %38 : vector<256x128xf32> to vector<1x256x128xf32>
    tpu.vector_store %arg6[%c1_20, %c0_21, %c0_22], %41 {strides = array<i32>} : memref<4x256x128xf32, #tpu.memory_space<vmem>>, vector<1x256x128xf32>,
    %c2 = arith.constant 2 : index
    %c0_23 = arith.constant 0 : index
    %c0_24 = arith.constant 0 : index
    %42 = vector.load %arg6[%c2, %c0_23, %c0_24] : memref<4x256x128xf32, #tpu.memory_space<vmem>>, vector<1x256x128xf32>
    %43 = vector.shape_cast %42 : vector<1x256x128xf32> to vector<256x128xf32>
    %44 = vector.shape_cast %32 : vector<256x128xf32> to vector<1x256x128xf32>
    tpu.vector_store %arg6[%c2, %c0_23, %c0_24], %44 {strides = array<i32>} : memref<4x256x128xf32, #tpu.memory_space<vmem>>, vector<1x256x128xf32>,
    %cst_25 = arith.constant 0.000000e+00 : f32
    %45 = vector.broadcast %cst_25 : f32 to vector<256x128xf32>
    %c3 = arith.constant 3 : index
    %c0_26 = arith.constant 0 : index
    %c0_27 = arith.constant 0 : index
    %46 = vector.load %arg6[%c3, %c0_26, %c0_27] : memref<4x256x128xf32, #tpu.memory_space<vmem>>, vector<1x256x128xf32>
    %47 = vector.shape_cast %46 : vector<1x256x128xf32> to vector<256x128xf32>
    %48 = vector.shape_cast %45 : vector<256x128xf32> to vector<1x256x128xf32>
    tpu.vector_store %arg6[%c3, %c0_26, %c0_27], %48 {strides = array<i32>} : memref<4x256x128xf32, #tpu.memory_space<vmem>>, vector<1x256x128xf32>,
    return
  }
  func.func @transform_0(%arg0: i32) -> (i32, i32, i32) {
    %c0_i32 = arith.constant 0 : i32
    %c0_i32_0 = arith.constant 0 : i32
    %c0_i32_1 = arith.constant 0 : i32
    return %c0_i32, %arg0, %c0_i32_0 : i32, i32, i32
  }
  func.func @transform_1(%arg0: i32) -> (i32, i32) {
    %c0_i32 = arith.constant 0 : i32
    %c0_i32_0 = arith.constant 0 : i32
    return %arg0, %c0_i32 : i32, i32
  }
  func.func @transform_2(%arg0: i32) -> (i32, i32, i32) {
    %c0_i32 = arith.constant 0 : i32
    %c0_i32_0 = arith.constant 0 : i32
    %c0_i32_1 = arith.constant 0 : i32
    return %arg0, %c0_i32, %c0_i32_0 : i32, i32, i32
  }
  func.func @transform_3(%arg0: i32) -> (i32, i32) {
    %c0_i32 = arith.constant 0 : i32
    %c0_i32_0 = arith.constant 0 : i32
    %c0_i32_1 = arith.constant 0 : i32
    return %c0_i32, %c0_i32_0 : i32, i32
  }
  func.func @transform_4(%arg0: i32) -> (i32, i32) {
    %c0_i32 = arith.constant 0 : i32
    %c0_i32_0 = arith.constant 0 : i32
    %c0_i32_1 = arith.constant 0 : i32
    return %c0_i32, %c0_i32_0 : i32, i32
  }
  func.func @transform_5(%arg0: i32) -> (i32, i32, i32) {
    %c0_i32 = arith.constant 0 : i32
    %c0_i32_0 = arith.constant 0 : i32
    %c0_i32_1 = arith.constant 0 : i32
    return %c0_i32, %arg0, %c0_i32_0 : i32, i32, i32
  }
}

</mosaic_0001>

<llo_original>
// kernel: odefunc_forward.1
$region0: #{odefunc_forward.1}
  #allocation0 [shape = 'u32[]', space=smem, size = 0x4, offset = 0x4, fixed_abs, tag = 'smem constant byte address 0x4 - core index']
  #allocation1 [shape = 'u32[144,128]{1,0:T(1,128)}', space=vmem, size = 0x12000, scoped, tag = 'internal scratch']
  #allocation6 [shape = 's32[]', space=sflag, size = 0x4, offset = 0, fixed_abs, tag = 'sflag constant byte address 0x0 - dummy sync flag']
  #allocation8 [shape = 's32[]', space=sflag, size = 0x4, offset = 0, fixed_abs, tag = 'sflag constant byte address 0x0 - dummy sync flag']
  %s0 = inlined_call_operand.hbm [shape: f32[4,512,128], index: 0, kind: input, shape index: {}]
  %s1 = inlined_call_operand.vmem [shape: f32[512,2], index: 1, kind: input, shape index: {}]
  %s2 = inlined_call_operand.vmem [shape: bf16[4,128,128], index: 2, kind: input, shape index: {}]
  %s3 = inlined_call_operand.vmem [shape: bf16[128,128], index: 3, kind: input, shape index: {}]
  %s4 = inlined_call_operand.vmem [shape: f32[1,128], index: 4, kind: input, shape index: {}]
  %s5 = inlined_call_operand.hbm [shape: f32[4,512,128], index: 5, kind: output, shape index: {}]
  %s6 = sld [smem:[#allocation0]]
  $region57: #{odefunc_forward.1} parent=0
    _
  %s8 = ssub.s32 1, %s6
  %s9 = scalar_select 0, %s8, %s6
  $region1: #{odefunc_forward.1} parent=0
    #allocation2 [shape = 'u8[524288]{0}', space=vmem, size = 0x80000, scoped, tag = 'input window, operand 0']
    #allocation3 [shape = 's32[2]{0}', space=sflag, size = 0x8, scoped, tag = 'scoped memory for odefunc_forward.1']
    #allocation4 [shape = 's32[2]{0}', space=sflag, size = 0x8, scoped, tag = 'scoped memory for odefunc_forward.1']
    #allocation5 [shape = 'u8[1048576]{0}', space=vmem, size = 0x100000, scoped, tag = 'output window, operand 0']
    %10 = vsyncpa [#allocation3], 0
    %s11 = scalar_lea.sflag [#allocation3], 1
    %12 = vsyncpa %s11, 0
    %13 = vsyncpa [#allocation4], 0
    %s14 = scalar_lea.sflag [#allocation4], 1
    %15 = vsyncpa %s14, 0
    loop: start=0, step=1, limit=4
    $region2: #{odefunc_forward.1} parent=1 // loop_pre_header
      _
    $region3: #{odefunc_forward.1} parent=1 // loop_header
      %s17 = sphi 0, %s21
      %p18 = scmp.ge.s32.totalorder %s17, 4
      %s27 = sphi 0, %s29
      %s30 = sphi 0, %s27
      %s31 = sphi 0, %s30
      %s47 = sphi 0, %s31
      %s53 = sphi 0, %s55
      %s56 = sphi 0, %s53
      %s57 = sphi 0, %s56
      %s73 = sphi 0, %s57
      %s79 = sphi 0, %s81
      %s82 = sphi 0, %s79
      %s83 = sphi 0, %s82
      %s99 = sphi 0, %s83
      %s103 = sphi 0, %s103
      %s105 = sphi 0, %s103
      %s106 = sphi 0, %s105
      %s120 = sphi 0, %s106
      %s124 = sphi 0, %s124
      %s126 = sphi 0, %s124
      %s127 = sphi 0, %s126
      %s141 = sphi 0, %s127
      %s147 = sphi 0, %s149
      %s150 = sphi 0, %s147
      %s151 = sphi 0, %s150
      %s167 = sphi 0, %s151
    $region4: #{odefunc_forward.1} parent=1 // loop_header_branch
      %20 = sbr.rel (%p18) target = $region8
    $region5: #{odefunc_forward.1} parent=1 // loop_body
      %s22 = ssub.s32 %s17, 1
      %s23 = ssub.s32 %s17, 2
      %s24 = sadd.s32 %s17, 1
      %s25 = ssub.s32 %s17, %s24
      %p26 = scmp.eq.s32.totalorder %s25, 0
      %s28 = sadd.s32 %s27, 1
      %s29 = scalar_select %p26, %s27, %s28
      %p32 = pneg %p26
      %p33 = scmp.eq.s32.totalorder %s17, 1
      %p34 = por %p32, %p33
      %p35 = scmp.ne.s32.totalorder %s27, %s30
      %p36 = scmp.eq.s32.totalorder %s17, 0
      %p37 = por %p35, %p36
      %p38 = scmp.ne.s32.totalorder %s27, %s30
      %p39 = scmp.eq.s32.totalorder %s22, 1
      %p40 = por %p38, %p39
      %p41 = scmp.ne.s32.totalorder %s30, %s31
      %p42 = scmp.eq.s32.totalorder %s22, 0
      %p43 = por %p41, %p42
      %p44 = scmp.ne.s32.totalorder %s30, %s31
      %p45 = scmp.eq.s32.totalorder %s23, 1
      %p46 = por %p44, %p45
      %p48 = scmp.ne.s32.totalorder %s31, %s47
      %p49 = scmp.eq.s32.totalorder %s23, 0
      %p50 = por %p48, %p49
      %s51 = ssub.s32 %s17, %s24
      %p52 = scmp.eq.s32.totalorder %s51, 0
      %s54 = sadd.s32 %s53, 1
      %s55 = scalar_select %p52, %s53, %s54
      %p58 = pneg %p52
      %p59 = scmp.eq.s32.totalorder %s17, 1
      %p60 = por %p58, %p59
      %p61 = scmp.ne.s32.totalorder %s53, %s56
      %p62 = scmp.eq.s32.totalorder %s17, 0
      %p63 = por %p61, %p62
      %p64 = scmp.ne.s32.totalorder %s53, %s56
      %p65 = scmp.eq.s32.totalorder %s22, 1
      %p66 = por %p64, %p65
      %p67 = scmp.ne.s32.totalorder %s56, %s57
      %p68 = scmp.eq.s32.totalorder %s22, 0
      %p69 = por %p67, %p68
      %p70 = scmp.ne.s32.totalorder %s56, %s57
      %p71 = scmp.eq.s32.totalorder %s23, 1
      %p72 = por %p70, %p71
      %p74 = scmp.ne.s32.totalorder %s57, %s73
      %p75 = scmp.eq.s32.totalorder %s23, 0
      %p76 = por %p74, %p75
      %s77 = ssub.s32 %s17, %s24
      %p78 = scmp.eq.s32.totalorder %s77, 0
      %s80 = sadd.s32 %s79, 1
      %s81 = scalar_select %p78, %s79, %s80
      %p84 = pneg %p78
      %p85 = scmp.eq.s32.totalorder %s17, 1
      %p86 = por %p84, %p85
      %p87 = scmp.ne.s32.totalorder %s79, %s82
      %p88 = scmp.eq.s32.totalorder %s17, 0
      %p89 = por %p87, %p88
      %p90 = scmp.ne.s32.totalorder %s79, %s82
      %p91 = scmp.eq.s32.totalorder %s22, 1
      %p92 = por %p90, %p91
      %p93 = scmp.ne.s32.totalorder %s82, %s83
      %p94 = scmp.eq.s32.totalorder %s22, 0
      %p95 = por %p93, %p94
      %p96 = scmp.ne.s32.totalorder %s82, %s83
      %p97 = scmp.eq.s32.totalorder %s23, 1
      %p98 = por %p96, %p97
      %p100 = scmp.ne.s32.totalorder %s83, %s99
      %p101 = scmp.eq.s32.totalorder %s23, 0
      %p102 = por %p100, %p101
      %s104 = sadd.s32 %s103, 1
      %p107 = scmp.eq.s32.totalorder %s17, 1
      %p108 = scmp.ne.s32.totalorder %s103, %s105
      %p109 = scmp.eq.s32.totalorder %s17, 0
      %p110 = por %p108, %p109
      %p111 = scmp.ne.s32.totalorder %s103, %s105
      %p112 = scmp.eq.s32.totalorder %s22, 1
      %p113 = por %p111, %p112
      %p114 = scmp.ne.s32.totalorder %s105, %s106
      %p115 = scmp.eq.s32.totalorder %s22, 0
      %p116 = por %p114, %p115
      %p117 = scmp.ne.s32.totalorder %s105, %s106
      %p118 = scmp.eq.s32.totalorder %s23, 1
      %p119 = por %p117, %p118
      %p121 = scmp.ne.s32.totalorder %s106, %s120
      %p122 = scmp.eq.s32.totalorder %s23, 0
      %p123 = por %p121, %p122
      %s125 = sadd.s32 %s124, 1
      %p128 = scmp.eq.s32.totalorder %s17, 1
      %p129 = scmp.ne.s32.totalorder %s124, %s126
      %p130 = scmp.eq.s32.totalorder %s17, 0
      %p131 = por %p129, %p130
      %p132 = scmp.ne.s32.totalorder %s124, %s126
      %p133 = scmp.eq.s32.totalorder %s22, 1
      %p134 = por %p132, %p133
      %p135 = scmp.ne.s32.totalorder %s126, %s127
      %p136 = scmp.eq.s32.totalorder %s22, 0
      %p137 = por %p135, %p136
      %p138 = scmp.ne.s32.totalorder %s126, %s127
      %p139 = scmp.eq.s32.totalorder %s23, 1
      %p140 = por %p138, %p139
      %p142 = scmp.ne.s32.totalorder %s127, %s141
      %p143 = scmp.eq.s32.totalorder %s23, 0
      %p144 = por %p142, %p143
      %s145 = ssub.s32 %s17, %s24
      %p146 = scmp.eq.s32.totalorder %s145, 0
      %s148 = sadd.s32 %s147, 1
      %s149 = scalar_select %p146, %s147, %s148
      %p152 = pneg %p146
      %p153 = scmp.eq.s32.totalorder %s17, 1
      %p154 = por %p152, %p153
      %p155 = scmp.ne.s32.totalorder %s147, %s150
      %p156 = scmp.eq.s32.totalorder %s17, 0
      %p157 = por %p155, %p156
      %p158 = scmp.ne.s32.totalorder %s147, %s150
      %p159 = scmp.eq.s32.totalorder %s22, 1
      %p160 = por %p158, %p159
      %p161 = scmp.ne.s32.totalorder %s150, %s151
      %p162 = scmp.eq.s32.totalorder %s22, 0
      %p163 = por %p161, %p162
      %p164 = scmp.ne.s32.totalorder %s150, %s151
      %p165 = scmp.eq.s32.totalorder %s23, 1
      %p166 = por %p164, %p165
      %p168 = scmp.ne.s32.totalorder %s151, %s167
      %p169 = scmp.eq.s32.totalorder %s23, 0
      %p170 = por %p168, %p169
      %p171 = scmp.le.s32.totalorder 1, %s17
      %p172 = scmp.lt.s32.totalorder %s17, 3
      %p173 = pnand %p171, %p172
      %p174 = pneg %p173
      // Predicated region
      $region9: #{odefunc_forward.1} parent=5 // pred_check
        _
      $region10: #{odefunc_forward.1} parent=5 // pred_check_branch
        %176 = sbr.rel (%p173) target = $region12
      $region11: #{odefunc_forward.1} parent=5 // pred_region
        %s177 = ssub.s32 %s17, 1
        // Predicated region
        $region13: #{odefunc_forward.1} parent=11 // pred_check
          %p178 = pneg %p116
        $region14: #{odefunc_forward.1} parent=11 // pred_check_branch
          %180 = sbr.rel (%p178) target = $region16
        $region15: #{odefunc_forward.1} parent=11 // pred_region
          _
        $region16: #{odefunc_forward.1} parent=11 // pred_fallthru
          _
        // Predicated region
        $region17: #{odefunc_forward.1} parent=11 // pred_check
          %p181 = pneg %p137
        $region18: #{odefunc_forward.1} parent=11 // pred_check_branch
          %183 = sbr.rel (%p181) target = $region20
        $region19: #{odefunc_forward.1} parent=11 // pred_region
          _
        $region20: #{odefunc_forward.1} parent=11 // pred_fallthru
          _
      $region12: #{odefunc_forward.1} parent=5 // pred_fallthru
        _
      %p184 = scmp.lt.s32.totalorder %s17, 2
      // Predicated region
      $region21: #{odefunc_forward.1} parent=5 // pred_check
        %p185 = pneg %p184
      $region22: #{odefunc_forward.1} parent=5 // pred_check_branch
        %187 = sbr.rel (%p185) target = $region24
      $region23: #{odefunc_forward.1} parent=5 // pred_region
        // Predicated region
        $region25: #{odefunc_forward.1} parent=23 // pred_check
          %p188 = pneg %p37
        $region26: #{odefunc_forward.1} parent=23 // pred_check_branch
          %190 = sbr.rel (%p188) target = $region28
        $region27: #{odefunc_forward.1} parent=23 // pred_region
          #allocation7 [shape = 'u32[6]{0}', space=smem, size = 0x18, scoped, tag = 'DMA stride descriptor']
          %s191 = sand.u32 %s27, 1
          %s192 = scalar_lea.sflag [#allocation3], %s191
          %s193 = sand.u32 %s27, 1
          %s194 = smul.addr %s193, 512
          %s195 = scalar_lea.vmem [#allocation2], %s194
          %s196 = smul.u32 32, %s17
          %s198 = ssub.s32 8192, 8192
          %199 = vsyncadd %s192, %s198
          %s200 = smul.addr %s196, 128
          %s201 = scalar_lea.hbm %s0, %s200
          %s203 = sshll.u32 1, 14
          %s204 = sxor.u32 4294967295, %s203
          %s206 = sld [smem:[#allocation0]]
          %s207 = sadd.s32 2, %s206
          %s209 = sshll.u32 7, 26
          %s210 = sxor.u32 4294967295, %s209
          %s211 = sand.u32 0, %s210
          %s212 = sshll.u32 %s207, 26
          %s213 = sor.u32 %s211, %s212
          %s214 = sshll.u32 %s195, 4
          %s215 = int_to_ptr.vmem [resolvable:$true] %s214
          %221 = sst [smem:[#allocation7]] 8192
          %s222 = scalar_lea.smem [#allocation7], 1
          %223 = sst [smem:[%s222]] 4096
          %s224 = scalar_lea.smem [#allocation7], 2
          %225 = sst [smem:[%s224]] 32
          %s226 = scalar_lea.smem [#allocation7], 3
          %227 = sst [smem:[%s226]] 128
          %s228 = scalar_lea.smem [#allocation7], 4
          %229 = sst [smem:[%s228]] 128
          %s230 = scalar_lea.smem [#allocation7], 5
          %231 = sst [smem:[%s230]] 8
          %233 = dma.general %s201, 8192, %s215, %s192, [#allocation6], [#allocation7], %s213, 0
        $region28: #{odefunc_forward.1} parent=23 // pred_fallthru
          _
        // Predicated region
        $region29: #{odefunc_forward.1} parent=23 // pred_check
          %p234 = pneg %p63
        $region30: #{odefunc_forward.1} parent=23 // pred_check_branch
          %236 = sbr.rel (%p234) target = $region32
        $region31: #{odefunc_forward.1} parent=23 // pred_region
          %s237 = smul.u32 32, %s17
          %p238 = scmp.lt.s32.totalorder %s237, 63
          %s239 = scalar_select %p238, %s237, 63
          %s240 = smul.addr %s239, 8
          %s241 = scalar_lea.vmem %s1, %s240
          %s242 = smul.u32 32, %s17
        $region32: #{odefunc_forward.1} parent=23 // pred_fallthru
          _
        // Predicated region
        $region33: #{odefunc_forward.1} parent=23 // pred_check
          %p243 = pneg %p89
        $region34: #{odefunc_forward.1} parent=23 // pred_check_branch
          %245 = sbr.rel (%p243) target = $region36
        $region35: #{odefunc_forward.1} parent=23 // pred_region
          %s246 = smul.u32 2, %s17
          %p247 = scmp.lt.s32.totalorder %s246, 3
          %s248 = scalar_select %p247, %s246, 3
          %s249 = smul.addr %s248, 16
          %s250 = smul.addr %s249, 4
          %s251 = scalar_lea.vmem %s2, %s250
          %s252 = smul.u32 2, %s17
        $region36: #{odefunc_forward.1} parent=23 // pred_fallthru
          _
      $region24: #{odefunc_forward.1} parent=5 // pred_fallthru
        _
      %p253 = scmp.le.s32.totalorder 1, %s17
      %p254 = scmp.lt.s32.totalorder %s17, 3
      %p255 = pnand %p253, %p254
      %p256 = pneg %p255
      // Predicated region
      $region37: #{odefunc_forward.1} parent=5 // pred_check
        _
      $region38: #{odefunc_forward.1} parent=5 // pred_check_branch
        %258 = sbr.rel (%p255) target = $region40
      $region39: #{odefunc_forward.1} parent=5 // pred_region
        %s259 = ssub.s32 %s17, 1
        %s260 = sand.u32 %s30, 1
        %s261 = scalar_lea.sflag [#allocation3], %s260
        %s262 = sand.u32 %s30, 1
        %s263 = smul.addr %s262, 512
        %s264 = scalar_lea.vmem [#allocation2], %s263
        // Predicated region
        $region41: #{odefunc_forward.1} parent=39 // pred_check
          %p265 = pneg %p43
        $region42: #{odefunc_forward.1} parent=39 // pred_check_branch
          %267 = sbr.rel (%p265) target = $region44
        $region43: #{odefunc_forward.1} parent=39 // pred_region
          %268 = dma.done %s261, 8192
        $region44: #{odefunc_forward.1} parent=39 // pred_fallthru
          _
        %s269 = sand.u32 %s30, 1
        %s270 = scalar_lea.sflag [#allocation3], %s269
        %s271 = sand.u32 %s30, 1
        %s272 = smul.addr %s271, 512
        %s273 = scalar_lea.vmem [#allocation2], %s272
        %p274 = pneg %p43
        %p275 = pneg %p40
        %s276 = smul.u32 32, %s22
        %p277 = scmp.lt.s32.totalorder %s276, 63
        %s278 = scalar_select %p277, %s276, 63
        %s279 = smul.addr %s278, 8
        %s280 = scalar_lea.vmem %s1, %s279
        %p281 = pneg %p69
        %p282 = pneg %p66
        %s283 = smul.u32 2, %s22
        %p284 = scmp.lt.s32.totalorder %s283, 3
        %s285 = scalar_select %p284, %s283, 3
        %s286 = smul.addr %s285, 16
        %s287 = smul.addr %s286, 4
        %s288 = scalar_lea.vmem %s2, %s287
        %p289 = pneg %p95
        %p290 = pneg %p92
        %p291 = pneg %p116
        %p292 = pneg %p113
        %p293 = pneg %p137
        %p294 = pneg %p134
        %p295 = pneg %p163
        %p296 = pneg %p160
        %s297 = sand.u32 %s150, 1
        %s298 = scalar_lea.sflag [#allocation4], %s297
        %s299 = sand.u32 %s150, 1
        %s300 = smul.addr %s299, 1024
        %s301 = scalar_lea.vmem [#allocation5], %s300
        %s302 = smul.u32 32, %s22
        %s303 = smul.u32 32, %s22
        %p304 = scmp.lt.s32.totalorder %s303, 63
        %s305 = scalar_select %p304, %s303, 63
        %s306 = smul.addr %s305, 8
        %s307 = scalar_lea.vmem %s1, %s306
        %s308 = smul.u32 32, %s22
        %s309 = smul.u32 2, %s22
        %p310 = scmp.lt.s32.totalorder %s309, 3
        %s311 = scalar_select %p310, %s309, 3
        %s312 = smul.addr %s311, 16
        %s313 = smul.addr %s312, 4
        %s314 = scalar_lea.vmem %s2, %s313
        %s315 = smul.u32 2, %s22
        %s316 = smul.u32 32, %s22
        %v318 = vld [vmem:[%s264] sm:$0xff]
        %v319 = vld [vmem:[%s264 + $0x8] sm:$0xff]
        %v320 = vld [vmem:[%s264 + $0x10] sm:$0xff]
        %v321 = vld [vmem:[%s264 + $0x18] sm:$0xff]
        %v322 = vld [vmem:[%s264 + $0x20] sm:$0xff]
        %v323 = vld [vmem:[%s264 + $0x28] sm:$0xff]
        %v324 = vld [vmem:[%s264 + $0x30] sm:$0xff]
        %v325 = vld [vmem:[%s264 + $0x38] sm:$0xff]
        %v326 = vld [vmem:[%s264 + $0x40] sm:$0xff]
        %v327 = vld [vmem:[%s264 + $0x48] sm:$0xff]
        %v328 = vld [vmem:[%s264 + $0x50] sm:$0xff]
        %v329 = vld [vmem:[%s264 + $0x58] sm:$0xff]
        %v330 = vld [vmem:[%s264 + $0x60] sm:$0xff]
        %v331 = vld [vmem:[%s264 + $0x68] sm:$0xff]
        %v332 = vld [vmem:[%s264 + $0x70] sm:$0xff]
        %v333 = vld [vmem:[%s264 + $0x78] sm:$0xff]
        %v334 = vld [vmem:[%s264 + $0x80] sm:$0xff]
        %v335 = vld [vmem:[%s264 + $0x88] sm:$0xff]
        %v336 = vld [vmem:[%s264 + $0x90] sm:$0xff]
        %v337 = vld [vmem:[%s264 + $0x98] sm:$0xff]
        %v338 = vld [vmem:[%s264 + $0xa0] sm:$0xff]
        %v339 = vld [vmem:[%s264 + $0xa8] sm:$0xff]
        %v340 = vld [vmem:[%s264 + $0xb0] sm:$0xff]
        %v341 = vld [vmem:[%s264 + $0xb8] sm:$0xff]
        %v342 = vld [vmem:[%s264 + $0xc0] sm:$0xff]
        %v343 = vld [vmem:[%s264 + $0xc8] sm:$0xff]
        %v344 = vld [vmem:[%s264 + $0xd0] sm:$0xff]
        %v345 = vld [vmem:[%s264 + $0xd8] sm:$0xff]
        %v346 = vld [vmem:[%s264 + $0xe0] sm:$0xff]
        %v347 = vld [vmem:[%s264 + $0xe8] sm:$0xff]
        %v348 = vld [vmem:[%s264 + $0xf0] sm:$0xff]
        %v349 = vld [vmem:[%s264 + $0xf8] sm:$0xff]
        %v350 = vld [vmem:[%s264 + $0x100] sm:$0xff]
        %v351 = vld [vmem:[%s264 + $0x108] sm:$0xff]
        %v352 = vld [vmem:[%s264 + $0x110] sm:$0xff]
        %v353 = vld [vmem:[%s264 + $0x118] sm:$0xff]
        %v354 = vld [vmem:[%s264 + $0x120] sm:$0xff]
        %v355 = vld [vmem:[%s264 + $0x128] sm:$0xff]
        %v356 = vld [vmem:[%s264 + $0x130] sm:$0xff]
        %v357 = vld [vmem:[%s264 + $0x138] sm:$0xff]
        %v358 = vld [vmem:[%s264 + $0x140] sm:$0xff]
        %v359 = vld [vmem:[%s264 + $0x148] sm:$0xff]
        %v360 = vld [vmem:[%s264 + $0x150] sm:$0xff]
        %v361 = vld [vmem:[%s264 + $0x158] sm:$0xff]
        %v362 = vld [vmem:[%s264 + $0x160] sm:$0xff]
        %v363 = vld [vmem:[%s264 + $0x168] sm:$0xff]
        %v364 = vld [vmem:[%s264 + $0x170] sm:$0xff]
        %v365 = vld [vmem:[%s264 + $0x178] sm:$0xff]
        %v366 = vld [vmem:[%s264 + $0x180] sm:$0xff]
        %v367 = vld [vmem:[%s264 + $0x188] sm:$0xff]
        %v368 = vld [vmem:[%s264 + $0x190] sm:$0xff]
        %v369 = vld [vmem:[%s264 + $0x198] sm:$0xff]
        %v370 = vld [vmem:[%s264 + $0x1a0] sm:$0xff]
        %v371 = vld [vmem:[%s264 + $0x1a8] sm:$0xff]
        %v372 = vld [vmem:[%s264 + $0x1b0] sm:$0xff]
        %v373 = vld [vmem:[%s264 + $0x1b8] sm:$0xff]
        %v374 = vld [vmem:[%s264 + $0x1c0] sm:$0xff]
        %v375 = vld [vmem:[%s264 + $0x1c8] sm:$0xff]
        %v376 = vld [vmem:[%s264 + $0x1d0] sm:$0xff]
        %v377 = vld [vmem:[%s264 + $0x1d8] sm:$0xff]
        %v378 = vld [vmem:[%s264 + $0x1e0] sm:$0xff]
        %v379 = vld [vmem:[%s264 + $0x1e8] sm:$0xff]
        %v380 = vld [vmem:[%s264 + $0x1f0] sm:$0xff]
        %v381 = vld [vmem:[%s264 + $0x1f8] sm:$0xff]
        %v382 = vpack.c.bf16 %v319, %v318
        %v383 = vpack.c.bf16 %v321, %v320
        %v384 = vpack.c.bf16 %v323, %v322
        %v385 = vpack.c.bf16 %v325, %v324
        %v386 = vpack.c.bf16 %v327, %v326
        %v387 = vpack.c.bf16 %v329, %v328
        %v388 = vpack.c.bf16 %v331, %v330
        %v389 = vpack.c.bf16 %v333, %v332
        %v390 = vpack.c.bf16 %v335, %v334
        %v391 = vpack.c.bf16 %v337, %v336
        %v392 = vpack.c.bf16 %v339, %v338
        %v393 = vpack.c.bf16 %v341, %v340
        %v394 = vpack.c.bf16 %v343, %v342
        %v395 = vpack.c.bf16 %v345, %v344
        %v396 = vpack.c.bf16 %v347, %v346
        %v397 = vpack.c.bf16 %v349, %v348
        %v398 = vpack.c.bf16 %v351, %v350
        %v399 = vpack.c.bf16 %v353, %v352
        %v400 = vpack.c.bf16 %v355, %v354
        %v401 = vpack.c.bf16 %v357, %v356
        %v402 = vpack.c.bf16 %v359, %v358
        %v403 = vpack.c.bf16 %v361, %v360
        %v404 = vpack.c.bf16 %v363, %v362
        %v405 = vpack.c.bf16 %v365, %v364
        %v406 = vpack.c.bf16 %v367, %v366
        %v407 = vpack.c.bf16 %v369, %v368
        %v408 = vpack.c.bf16 %v371, %v370
        %v409 = vpack.c.bf16 %v373, %v372
        %v410 = vpack.c.bf16 %v375, %v374
        %v411 = vpack.c.bf16 %v377, %v376
        %v412 = vpack.c.bf16 %v379, %v378
        %v413 = vpack.c.bf16 %v381, %v380
        %v414 = vld [vmem:[%s3] sm:$0xf]
        %v415 = vld [vmem:[%s3 + $0x4] sm:$0xf]
        %v416 = vld [vmem:[%s3 + $0x8] sm:$0xf]
        %v417 = vld [vmem:[%s3 + $0xc] sm:$0xf]
        %v418 = vld [vmem:[%s3 + $0x10] sm:$0xf]
        %v419 = vld [vmem:[%s3 + $0x14] sm:$0xf]
        %v420 = vld [vmem:[%s3 + $0x18] sm:$0xf]
        %v421 = vld [vmem:[%s3 + $0x1c] sm:$0xf]
        %v422 = vld [vmem:[%s3 + $0x20] sm:$0xf]
        %v423 = vld [vmem:[%s3 + $0x24] sm:$0xf]
        %v424 = vld [vmem:[%s3 + $0x28] sm:$0xf]
        %v425 = vld [vmem:[%s3 + $0x2c] sm:$0xf]
        %v426 = vld [vmem:[%s3 + $0x30] sm:$0xf]
        %v427 = vld [vmem:[%s3 + $0x34] sm:$0xf]
        %v428 = vld [vmem:[%s3 + $0x38] sm:$0xf]
        %v429 = vld [vmem:[%s3 + $0x3c] sm:$0xf]
        %v430 = vld [vmem:[%s4] sm:$0x1]
        %v432 = vlaneseq
        %v433 = vshrl.u32 %v432, 7
        %v434 = vsub.s32 0, %v433
        %v435 = vrot.slane %v430, %v434
        %v453 = vunpack.c.l.b16 %v414
        %v454 = vunpack.c.l.b16 %v415
        %v455 = vunpack.c.l.b16 %v416
        %v456 = vunpack.c.l.b16 %v417
        %v457 = vunpack.c.l.b16 %v418
        %v458 = vunpack.c.l.b16 %v419
        %v459 = vunpack.c.l.b16 %v420
        %v460 = vunpack.c.l.b16 %v421
        %v461 = vunpack.c.l.b16 %v422
        %v462 = vunpack.c.l.b16 %v423
        %v463 = vunpack.c.l.b16 %v424
        %v464 = vunpack.c.l.b16 %v425
        %v465 = vunpack.c.l.b16 %v426
        %v466 = vunpack.c.l.b16 %v427
        %v467 = vunpack.c.l.b16 %v428
        %v468 = vunpack.c.l.b16 %v429
        %v469 = vpack.c.b16 %v454, %v453
        %v470 = vpack.c.b16 %v456, %v455
        %v471 = vpack.c.b16 %v458, %v457
        %v472 = vpack.c.b16 %v460, %v459
        %v473 = vpack.c.b16 %v462, %v461
        %v474 = vpack.c.b16 %v464, %v463
        %v475 = vpack.c.b16 %v466, %v465
        %v476 = vpack.c.b16 %v468, %v467
        %485 = vmatprep.subr.bf16.mxu0 0
        %486 = vmatpush1.bf16.msra.mxu0 %v469
        %487 = vmatprep.subr.bf16.mxu0 0
        %488 = vmatpush1.bf16.msra.mxu0 %v470
        %489 = vmatprep.subr.bf16.mxu0 0
        %490 = vmatpush1.bf16.msra.mxu0 %v471
        %491 = vmatprep.subr.bf16.mxu0 0
        %492 = vmatpush1.bf16.msra.mxu0 %v472
        %493 = vmatprep.subr.bf16.mxu0 0
        %494 = vmatpush1.bf16.msra.mxu0 %v473
        %495 = vmatprep.subr.bf16.mxu0 0
        %496 = vmatpush1.bf16.msra.mxu0 %v474
        %497 = vmatprep.subr.bf16.mxu0 0
        %498 = vmatpush1.bf16.msra.mxu0 %v475
        %499 = vmatprep.subr.bf16.mxu0 0
        %500 = vmatpush1.bf16.msra.mxu0 %v476
        %501 = vmatprep.subr.bf16.mxu0 0
        %502 = vmatpush1.bf16.msra.mxu0 0
        %503 = vmatprep.subr.bf16.mxu0 0
        %504 = vmatpush1.bf16.msra.mxu0 0
        %505 = vmatprep.subr.bf16.mxu0 0
        %506 = vmatpush1.bf16.msra.mxu0 0
        %507 = vmatprep.subr.bf16.mxu0 0
        %508 = vmatpush1.bf16.msra.mxu0 0
        %509 = vmatprep.subr.bf16.mxu0 0
        %510 = vmatpush1.bf16.msra.mxu0 0
        %511 = vmatprep.subr.bf16.mxu0 0
        %512 = vmatpush1.bf16.msra.mxu0 0
        %513 = vmatprep.subr.bf16.mxu0 0
        %514 = vmatpush1.bf16.msra.mxu0 0
        %515 = vmatprep.subr.bf16.mxu0 0
        %516 = vmatpush1.bf16.msra.mxu0 0
        %517 = vmatprep.mubr.bf16.mxu0 0
        %518 = vmatmul.mubr.bf16.gmra.mrb[0].mxu0 %v382
        %v519 = vpop.f32.mrb[0].mxu0
        %v520 = vadd.f32 %v435, %v519
        %v521 = vpop.f32.mrb[0].mxu0
        %v522 = vpop.f32.mrb[0].mxu0
        %v523 = vadd.f32 %v435, %v522
        %v524 = vpop.f32.mrb[0].mxu0
        %525 = vmatprep.mubr.bf16.mxu0 0
        %526 = vmatmul.mubr.bf16.gmra.mrb[0].mxu0 %v383
        %v527 = vpop.f32.mrb[0].mxu0
        %v528 = vadd.f32 %v435, %v527
        %v529 = vpop.f32.mrb[0].mxu0
        %v530 = vpop.f32.mrb[0].mxu0
        %v531 = vadd.f32 %v435, %v530
        %v532 = vpop.f32.mrb[0].mxu0
        %533 = vmatprep.mubr.bf16.mxu0 0
        %534 = vmatmul.mubr.bf16.gmra.mrb[0].mxu0 %v384
        %v535 = vpop.f32.mrb[0].mxu0
        %v536 = vadd.f32 %v435, %v535
        %v537 = vpop.f32.mrb[0].mxu0
        %v538 = vpop.f32.mrb[0].mxu0
        %v539 = vadd.f32 %v435, %v538
        %v540 = vpop.f32.mrb[0].mxu0
        %541 = vmatprep.mubr.bf16.mxu0 0
        %542 = vmatmul.mubr.bf16.gmra.mrb[0].mxu0 %v385
        %v543 = vpop.f32.mrb[0].mxu0
        %v544 = vadd.f32 %v435, %v543
        %v545 = vpop.f32.mrb[0].mxu0
        %v546 = vpop.f32.mrb[0].mxu0
        %v547 = vadd.f32 %v435, %v546
        %v548 = vpop.f32.mrb[0].mxu0
        %549 = vmatprep.mubr.bf16.mxu0 0
        %550 = vmatmul.mubr.bf16.gmra.mrb[0].mxu0 %v386
        %v551 = vpop.f32.mrb[0].mxu0
        %v552 = vadd.f32 %v435, %v551
        %v553 = vpop.f32.mrb[0].mxu0
        %v554 = vpop.f32.mrb[0].mxu0
        %v555 = vadd.f32 %v435, %v554
        %v556 = vpop.f32.mrb[0].mxu0
        %557 = vmatprep.mubr.bf16.mxu0 0
        %558 = vmatmul.mubr.bf16.gmra.mrb[0].mxu0 %v387
        %v559 = vpop.f32.mrb[0].mxu0
        %v560 = vadd.f32 %v435, %v559
        %v561 = vpop.f32.mrb[0].mxu0
        %v562 = vpop.f32.mrb[0].mxu0
        %v563 = vadd.f32 %v435, %v562
        %v564 = vpop.f32.mrb[0].mxu0
        %565 = vmatprep.mubr.bf16.mxu0 0
        %566 = vmatmul.mubr.bf16.gmra.mrb[0].mxu0 %v388
        %v567 = vpop.f32.mrb[0].mxu0
        %v568 = vadd.f32 %v435, %v567
        %v569 = vpop.f32.mrb[0].mxu0
        %v570 = vpop.f32.mrb[0].mxu0
        %v571 = vadd.f32 %v435, %v570
        %v572 = vpop.f32.mrb[0].mxu0
        %573 = vmatprep.mubr.bf16.mxu0 0
        %574 = vmatmul.mubr.bf16.gmra.mrb[0].mxu0 %v389
        %v575 = vpop.f32.mrb[0].mxu0
        %v576 = vadd.f32 %v435, %v575
        %v577 = vpop.f32.mrb[0].mxu0
        %v578 = vpop.f32.mrb[0].mxu0
        %v579 = vadd.f32 %v435, %v578
        %v580 = vpop.f32.mrb[0].mxu0
        %581 = vmatprep.mubr.bf16.mxu0 0
        %582 = vmatmul.mubr.bf16.gmra.mrb[0].mxu0 %v390
        %v583 = vpop.f32.mrb[0].mxu0
        %v584 = vadd.f32 %v435, %v583
        %v585 = vpop.f32.mrb[0].mxu0
        %v586 = vpop.f32.mrb[0].mxu0
        %v587 = vadd.f32 %v435, %v586
        %v588 = vpop.f32.mrb[0].mxu0
        %589 = vmatprep.mubr.bf16.mxu0 0
        %590 = vmatmul.mubr.bf16.gmra.mrb[0].mxu0 %v391
        %v591 = vpop.f32.mrb[0].mxu0
        %v592 = vadd.f32 %v435, %v591
        %v593 = vpop.f32.mrb[0].mxu0
        %v594 = vpop.f32.mrb[0].mxu0
        %v595 = vadd.f32 %v435, %v594
        %v596 = vpop.f32.mrb[0].mxu0
        %597 = vmatprep.mubr.bf16.mxu0 0
        %598 = vmatmul.mubr.bf16.gmra.mrb[0].mxu0 %v392
        %v599 = vpop.f32.mrb[0].mxu0
        %v600 = vadd.f32 %v435, %v599
        %v601 = vpop.f32.mrb[0].mxu0
        %v602 = vpop.f32.mrb[0].mxu0
        %v603 = vadd.f32 %v435, %v602
        %v604 = vpop.f32.mrb[0].mxu0
        %605 = vmatprep.mubr.bf16.mxu0 0
        %606 = vmatmul.mubr.bf16.gmra.mrb[0].mxu0 %v393
        %v607 = vpop.f32.mrb[0].mxu0
        %v608 = vadd.f32 %v435, %v607
        %v609 = vpop.f32.mrb[0].mxu0
        %v610 = vpop.f32.mrb[0].mxu0
        %v611 = vadd.f32 %v435, %v610
        %v612 = vpop.f32.mrb[0].mxu0
        %613 = vmatprep.mubr.bf16.mxu0 0
        %614 = vmatmul.mubr.bf16.gmra.mrb[0].mxu0 %v394
        %v615 = vpop.f32.mrb[0].mxu0
        %v616 = vadd.f32 %v435, %v615
        %v617 = vpop.f32.mrb[0].mxu0
        %v618 = vpop.f32.mrb[0].mxu0
        %v619 = vadd.f32 %v435, %v618
        %v620 = vpop.f32.mrb[0].mxu0
        %621 = vmatprep.mubr.bf16.mxu0 0
        %622 = vmatmul.mubr.bf16.gmra.mrb[0].mxu0 %v395
        %v623 = vpop.f32.mrb[0].mxu0
        %v624 = vadd.f32 %v435, %v623
        %v625 = vpop.f32.mrb[0].mxu0
        %v626 = vpop.f32.mrb[0].mxu0
        %v627 = vadd.f32 %v435, %v626
        %v628 = vpop.f32.mrb[0].mxu0
        %629 = vmatprep.mubr.bf16.mxu0 0
        %630 = vmatmul.mubr.bf16.gmra.mrb[0].mxu0 %v396
        %v631 = vpop.f32.mrb[0].mxu0
        %v632 = vadd.f32 %v435, %v631
        %v633 = vpop.f32.mrb[0].mxu0
        %v634 = vpop.f32.mrb[0].mxu0
        %v635 = vadd.f32 %v435, %v634
        %v636 = vpop.f32.mrb[0].mxu0
        %637 = vmatprep.mubr.bf16.mxu0 0
        %638 = vmatmul.mubr.bf16.gmra.mrb[0].mxu0 %v397
        %v639 = vpop.f32.mrb[0].mxu0
        %v640 = vadd.f32 %v435, %v639
        %v641 = vpop.f32.mrb[0].mxu0
        %v642 = vpop.f32.mrb[0].mxu0
        %v643 = vadd.f32 %v435, %v642
        %v644 = vpop.f32.mrb[0].mxu0
        %645 = vmatprep.mubr.bf16.mxu0 0
        %646 = vmatmul.mubr.bf16.gmra.mrb[0].mxu0 %v398
        %v647 = vpop.f32.mrb[0].mxu0
        %v648 = vadd.f32 %v435, %v647
        %v649 = vpop.f32.mrb[0].mxu0
        %v650 = vpop.f32.mrb[0].mxu0
        %v651 = vadd.f32 %v435, %v650
        %v652 = vpop.f32.mrb[0].mxu0
        %653 = vmatprep.mubr.bf16.mxu0 0
        %654 = vmatmul.mubr.bf16.gmra.mrb[0].mxu0 %v399
        %v655 = vpop.f32.mrb[0].mxu0
        %v656 = vadd.f32 %v435, %v655
        %v657 = vpop.f32.mrb[0].mxu0
        %v658 = vpop.f32.mrb[0].mxu0
        %v659 = vadd.f32 %v435, %v658
        %v660 = vpop.f32.mrb[0].mxu0
        %661 = vmatprep.mubr.bf16.mxu0 0
        %662 = vmatmul.mubr.bf16.gmra.mrb[0].mxu0 %v400
        %v663 = vpop.f32.mrb[0].mxu0
        %v664 = vadd.f32 %v435, %v663
        %v665 = vpop.f32.mrb[0].mxu0
        %v666 = vpop.f32.mrb[0].mxu0
        %v667 = vadd.f32 %v435, %v666
        %v668 = vpop.f32.mrb[0].mxu0
        %669 = vmatprep.mubr.bf16.mxu0 0
        %670 = vmatmul.mubr.bf16.gmra.mrb[0].mxu0 %v401
        %v671 = vpop.f32.mrb[0].mxu0
        %v672 = vadd.f32 %v435, %v671
        %v673 = vpop.f32.mrb[0].mxu0
        %v674 = vpop.f32.mrb[0].mxu0
        %v675 = vadd.f32 %v435, %v674
        %v676 = vpop.f32.mrb[0].mxu0
        %677 = vmatprep.mubr.bf16.mxu0 0
        %678 = vmatmul.mubr.bf16.gmra.mrb[0].mxu0 %v402
        %v679 = vpop.f32.mrb[0].mxu0
        %v680 = vadd.f32 %v435, %v679
        %v681 = vpop.f32.mrb[0].mxu0
        %v682 = vpop.f32.mrb[0].mxu0
        %v683 = vadd.f32 %v435, %v682
        %v684 = vpop.f32.mrb[0].mxu0
        %685 = vmatprep.mubr.bf16.mxu0 0
        %686 = vmatmul.mubr.bf16.gmra.mrb[0].mxu0 %v403
        %v687 = vpop.f32.mrb[0].mxu0
        %v688 = vadd.f32 %v435, %v687
        %v689 = vpop.f32.mrb[0].mxu0
        %v690 = vpop.f32.mrb[0].mxu0
        %v691 = vadd.f32 %v435, %v690
        %v692 = vpop.f32.mrb[0].mxu0
        %693 = vmatprep.mubr.bf16.mxu0 0
        %694 = vmatmul.mubr.bf16.gmra.mrb[0].mxu0 %v404
        %v695 = vpop.f32.mrb[0].mxu0
        %v696 = vadd.f32 %v435, %v695
        %v697 = vpop.f32.mrb[0].mxu0
        %v698 = vpop.f32.mrb[0].mxu0
        %v699 = vadd.f32 %v435, %v698
        %v700 = vpop.f32.mrb[0].mxu0
        %701 = vmatprep.mubr.bf16.mxu0 0
        %702 = vmatmul.mubr.bf16.gmra.mrb[0].mxu0 %v405
        %v703 = vpop.f32.mrb[0].mxu0
        %v704 = vadd.f32 %v435, %v703
        %v705 = vpop.f32.mrb[0].mxu0
        %v706 = vpop.f32.mrb[0].mxu0
        %v707 = vadd.f32 %v435, %v706
        %v708 = vpop.f32.mrb[0].mxu0
        %709 = vmatprep.mubr.bf16.mxu0 0
        %710 = vmatmul.mubr.bf16.gmra.mrb[0].mxu0 %v406
        %v711 = vpop.f32.mrb[0].mxu0
        %v712 = vadd.f32 %v435, %v711
        %v713 = vpop.f32.mrb[0].mxu0
        %v714 = vpop.f32.mrb[0].mxu0
        %v715 = vadd.f32 %v435, %v714
        %v716 = vpop.f32.mrb[0].mxu0
        %717 = vmatprep.mubr.bf16.mxu0 0
        %718 = vmatmul.mubr.bf16.gmra.mrb[0].mxu0 %v407
        %v719 = vpop.f32.mrb[0].mxu0
        %v720 = vadd.f32 %v435, %v719
        %v721 = vpop.f32.mrb[0].mxu0
        %v722 = vpop.f32.mrb[0].mxu0
        %v723 = vadd.f32 %v435, %v722
        %v724 = vpop.f32.mrb[0].mxu0
        %725 = vmatprep.mubr.bf16.mxu0 0
        %726 = vmatmul.mubr.bf16.gmra.mrb[0].mxu0 %v408
        %v727 = vpop.f32.mrb[0].mxu0
        %v728 = vadd.f32 %v435, %v727
        %v729 = vpop.f32.mrb[0].mxu0
        %v730 = vpop.f32.mrb[0].mxu0
        %v731 = vadd.f32 %v435, %v730
        %v732 = vpop.f32.mrb[0].mxu0
        %733 = vmatprep.mubr.bf16.mxu0 0
        %734 = vmatmul.mubr.bf16.gmra.mrb[0].mxu0 %v409
        %v735 = vpop.f32.mrb[0].mxu0
        %v736 = vadd.f32 %v435, %v735
        %v737 = vpop.f32.mrb[0].mxu0
        %v738 = vpop.f32.mrb[0].mxu0
        %v739 = vadd.f32 %v435, %v738
        %v740 = vpop.f32.mrb[0].mxu0
        %741 = vmatprep.mubr.bf16.mxu0 0
        %742 = vmatmul.mubr.bf16.gmra.mrb[0].mxu0 %v410
        %v743 = vpop.f32.mrb[0].mxu0
        %v744 = vadd.f32 %v435, %v743
        %v745 = vpop.f32.mrb[0].mxu0
        %v746 = vpop.f32.mrb[0].mxu0
        %v747 = vadd.f32 %v435, %v746
        %v748 = vpop.f32.mrb[0].mxu0
        %749 = vmatprep.mubr.bf16.mxu0 0
        %750 = vmatmul.mubr.bf16.gmra.mrb[0].mxu0 %v411
        %v751 = vpop.f32.mrb[0].mxu0
        %v752 = vadd.f32 %v435, %v751
        %v753 = vpop.f32.mrb[0].mxu0
        %v754 = vpop.f32.mrb[0].mxu0
        %v755 = vadd.f32 %v435, %v754
        %v756 = vpop.f32.mrb[0].mxu0
        %757 = vmatprep.mubr.bf16.mxu0 0
        %758 = vmatmul.mubr.bf16.gmra.mrb[0].mxu0 %v412
        %v759 = vpop.f32.mrb[0].mxu0
        %v760 = vadd.f32 %v435, %v759
        %v761 = vpop.f32.mrb[0].mxu0
        %v762 = vpop.f32.mrb[0].mxu0
        %v763 = vadd.f32 %v435, %v762
        %v764 = vpop.f32.mrb[0].mxu0
        %765 = vmatprep.mubr.bf16.mxu0 0
        %766 = vmatmul.mubr.bf16.gmra.mrb[0].mxu0 %v413
        %v767 = vpop.f32.mrb[0].mxu0
        %v768 = vadd.f32 %v435, %v767
        %v769 = vpop.f32.mrb[0].mxu0
        %v770 = vpop.f32.mrb[0].mxu0
        %v771 = vadd.f32 %v435, %v770
        %v772 = vpop.f32.mrb[0].mxu0
        %773 = vdwg.mxu0
        %v774 = vsub.f32 0.0, %v520
        %v775 = vsub.f32 0.0, %v523
        %v776 = vsub.f32 0.0, %v528
        %v777 = vsub.f32 0.0, %v531
        %v778 = vsub.f32 0.0, %v536
        %v779 = vsub.f32 0.0, %v539
        %v780 = vsub.f32 0.0, %v544
        %v781 = vsub.f32 0.0, %v547
        %v782 = vsub.f32 0.0, %v552
        %v783 = vsub.f32 0.0, %v555
        %v784 = vsub.f32 0.0, %v560
        %v785 = vsub.f32 0.0, %v563
        %v786 = vsub.f32 0.0, %v568
        %v787 = vsub.f32 0.0, %v571
        %v788 = vsub.f32 0.0, %v576
        %v789 = vsub.f32 0.0, %v579
        %v790 = vsub.f32 0.0, %v584
        %v791 = vsub.f32 0.0, %v587
        %v792 = vsub.f32 0.0, %v592
        %v793 = vsub.f32 0.0, %v595
        %v794 = vsub.f32 0.0, %v600
        %v795 = vsub.f32 0.0, %v603
        %v796 = vsub.f32 0.0, %v608
        %v797 = vsub.f32 0.0, %v611
        %v798 = vsub.f32 0.0, %v616
        %v799 = vsub.f32 0.0, %v619
        %v800 = vsub.f32 0.0, %v624
        %v801 = vsub.f32 0.0, %v627
        %v802 = vsub.f32 0.0, %v632
        %v803 = vsub.f32 0.0, %v635
        %v804 = vsub.f32 0.0, %v640
        %v805 = vsub.f32 0.0, %v643
        %v806 = vsub.f32 0.0, %v648
        %v807 = vsub.f32 0.0, %v651
        %v808 = vsub.f32 0.0, %v656
        %v809 = vsub.f32 0.0, %v659
        %v810 = vsub.f32 0.0, %v664
        %v811 = vsub.f32 0.0, %v667
        %v812 = vsub.f32 0.0, %v672
        %v813 = vsub.f32 0.0, %v675
        %v814 = vsub.f32 0.0, %v680
        %v815 = vsub.f32 0.0, %v683
        %v816 = vsub.f32 0.0, %v688
        %v817 = vsub.f32 0.0, %v691
        %v818 = vsub.f32 0.0, %v696
        %v819 = vsub.f32 0.0, %v699
        %v820 = vsub.f32 0.0, %v704
        %v821 = vsub.f32 0.0, %v707
        %v822 = vsub.f32 0.0, %v712
        %v823 = vsub.f32 0.0, %v715
        %v824 = vsub.f32 0.0, %v720
        %v825 = vsub.f32 0.0, %v723
        %v826 = vsub.f32 0.0, %v728
        %v827 = vsub.f32 0.0, %v731
        %v828 = vsub.f32 0.0, %v736
        %v829 = vsub.f32 0.0, %v739
        %v830 = vsub.f32 0.0, %v744
        %v831 = vsub.f32 0.0, %v747
        %v832 = vsub.f32 0.0, %v752
        %v833 = vsub.f32 0.0, %v755
        %v834 = vsub.f32 0.0, %v760
        %v835 = vsub.f32 0.0, %v763
        %v836 = vsub.f32 0.0, %v768
        %v837 = vsub.f32 0.0, %v771
        %v838 = vmul.f32 %v774, 1.442695
        %v839 = vpow.pop %v838
        %v840 = vmul.f32 %v775, 1.442695
        %v841 = vpow.pop %v840
        %v842 = vmul.f32 %v776, 1.442695
        %v843 = vpow.pop %v842
        %v844 = vmul.f32 %v777, 1.442695
        %v845 = vpow.pop %v844
        %v846 = vmul.f32 %v778, 1.442695
        %v847 = vpow.pop %v846
        %v848 = vmul.f32 %v779, 1.442695
        %v849 = vpow.pop %v848
        %v850 = vmul.f32 %v780, 1.442695
        %v851 = vpow.pop %v850
        %v852 = vmul.f32 %v781, 1.442695
        %v853 = vpow.pop %v852
        %v854 = vmul.f32 %v782, 1.442695
        %v855 = vpow.pop %v854
        %v856 = vmul.f32 %v783, 1.442695
        %v857 = vpow.pop %v856
        %v858 = vmul.f32 %v784, 1.442695
        %v859 = vpow.pop %v858
        %v860 = vmul.f32 %v785, 1.442695
        %v861 = vpow.pop %v860
        %v862 = vmul.f32 %v786, 1.442695
        %v863 = vpow.pop %v862
        %v864 = vmul.f32 %v787, 1.442695
        %v865 = vpow.pop %v864
        %v866 = vmul.f32 %v788, 1.442695
        %v867 = vpow.pop %v866
        %v868 = vmul.f32 %v789, 1.442695
        %v869 = vpow.pop %v868
        %v870 = vmul.f32 %v790, 1.442695
        %v871 = vpow.pop %v870
        %v872 = vmul.f32 %v791, 1.442695
        %v873 = vpow.pop %v872
        %v874 = vmul.f32 %v792, 1.442695
        %v875 = vpow.pop %v874
        %v876 = vmul.f32 %v793, 1.442695
        %v877 = vpow.pop %v876
        %v878 = vmul.f32 %v794, 1.442695
        %v879 = vpow.pop %v878
        %v880 = vmul.f32 %v795, 1.442695
        %v881 = vpow.pop %v880
        %v882 = vmul.f32 %v796, 1.442695
        %v883 = vpow.pop %v882
        %v884 = vmul.f32 %v797, 1.442695
        %v885 = vpow.pop %v884
        %v886 = vmul.f32 %v798, 1.442695
        %v887 = vpow.pop %v886
        %v888 = vmul.f32 %v799, 1.442695
        %v889 = vpow.pop %v888
        %v890 = vmul.f32 %v800, 1.442695
        %v891 = vpow.pop %v890
        %v892 = vmul.f32 %v801, 1.442695
        %v893 = vpow.pop %v892
        %v894 = vmul.f32 %v802, 1.442695
        %v895 = vpow.pop %v894
        %v896 = vmul.f32 %v803, 1.442695
        %v897 = vpow.pop %v896
        %v898 = vmul.f32 %v804, 1.442695
        %v899 = vpow.pop %v898
        %v900 = vmul.f32 %v805, 1.442695
        %v901 = vpow.pop %v900
        %v902 = vmul.f32 %v806, 1.442695
        %v903 = vpow.pop %v902
        %v904 = vmul.f32 %v807, 1.442695
        %v905 = vpow.pop %v904
        %v906 = vmul.f32 %v808, 1.442695
        %v907 = vpow.pop %v906
        %v908 = vmul.f32 %v809, 1.442695
        %v909 = vpow.pop %v908
        %v910 = vmul.f32 %v810, 1.442695
        %v911 = vpow.pop %v910
        %v912 = vmul.f32 %v811, 1.442695
        %v913 = vpow.pop %v912
        %v914 = vmul.f32 %v812, 1.442695
        %v915 = vpow.pop %v914
        %v916 = vmul.f32 %v813, 1.442695
        %v917 = vpow.pop %v916
        %v918 = vmul.f32 %v814, 1.442695
        %v919 = vpow.pop %v918
        %v920 = vmul.f32 %v815, 1.442695
        %v921 = vpow.pop %v920
        %v922 = vmul.f32 %v816, 1.442695
        %v923 = vpow.pop %v922
        %v924 = vmul.f32 %v817, 1.442695
        %v925 = vpow.pop %v924
        %v926 = vmul.f32 %v818, 1.442695
        %v927 = vpow.pop %v926
        %v928 = vmul.f32 %v819, 1.442695
        %v929 = vpow.pop %v928
        %v930 = vmul.f32 %v820, 1.442695
        %v931 = vpow.pop %v930
        %v932 = vmul.f32 %v821, 1.442695
        %v933 = vpow.pop %v932
        %v934 = vmul.f32 %v822, 1.442695
        %v935 = vpow.pop %v934
        %v936 = vmul.f32 %v823, 1.442695
        %v937 = vpow.pop %v936
        %v938 = vmul.f32 %v824, 1.442695
        %v939 = vpow.pop %v938
        %v940 = vmul.f32 %v825, 1.442695
        %v941 = vpow.pop %v940
        %v942 = vmul.f32 %v826, 1.442695
        %v943 = vpow.pop %v942
        %v944 = vmul.f32 %v827, 1.442695
        %v945 = vpow.pop %v944
        %v946 = vmul.f32 %v828, 1.442695
        %v947 = vpow.pop %v946
        %v948 = vmul.f32 %v829, 1.442695
        %v949 = vpow.pop %v948
        %v950 = vmul.f32 %v830, 1.442695
        %v951 = vpow.pop %v950
        %v952 = vmul.f32 %v831, 1.442695
        %v953 = vpow.pop %v952
        %v954 = vmul.f32 %v832, 1.442695
        %v955 = vpow.pop %v954
        %v956 = vmul.f32 %v833, 1.442695
        %v957 = vpow.pop %v956
        %v958 = vmul.f32 %v834, 1.442695
        %v959 = vpow.pop %v958
        %v960 = vmul.f32 %v835, 1.442695
        %v961 = vpow.pop %v960
        %v962 = vmul.f32 %v836, 1.442695
        %v963 = vpow.pop %v962
        %v964 = vmul.f32 %v837, 1.442695
        %v965 = vpow.pop %v964
        %v966 = vadd.f32 %v839, 1.0
        %v967 = vadd.f32 %v841, 1.0
        %v968 = vadd.f32 %v843, 1.0
        %v969 = vadd.f32 %v845, 1.0
        %v970 = vadd.f32 %v847, 1.0
        %v971 = vadd.f32 %v849, 1.0
        %v972 = vadd.f32 %v851, 1.0
        %v973 = vadd.f32 %v853, 1.0
        %v974 = vadd.f32 %v855, 1.0
        %v975 = vadd.f32 %v857, 1.0
        %v976 = vadd.f32 %v859, 1.0
        %v977 = vadd.f32 %v861, 1.0
        %v978 = vadd.f32 %v863, 1.0
        %v979 = vadd.f32 %v865, 1.0
        %v980 = vadd.f32 %v867, 1.0
        %v981 = vadd.f32 %v869, 1.0
        %v982 = vadd.f32 %v871, 1.0
        %v983 = vadd.f32 %v873, 1.0
        %v984 = vadd.f32 %v875, 1.0
        %v985 = vadd.f32 %v877, 1.0
        %v986 = vadd.f32 %v879, 1.0
        %v987 = vadd.f32 %v881, 1.0
        %v988 = vadd.f32 %v883, 1.0
        %v989 = vadd.f32 %v885, 1.0
        %v990 = vadd.f32 %v887, 1.0
        %v991 = vadd.f32 %v889, 1.0
        %v992 = vadd.f32 %v891, 1.0
        %v993 = vadd.f32 %v893, 1.0
        %v994 = vadd.f32 %v895, 1.0
        %v995 = vadd.f32 %v897, 1.0
        %v996 = vadd.f32 %v899, 1.0
        %v997 = vadd.f32 %v901, 1.0
        %v998 = vadd.f32 %v903, 1.0
        %v999 = vadd.f32 %v905, 1.0
        %v1000 = vadd.f32 %v907, 1.0
        %v1001 = vadd.f32 %v909, 1.0
        %v1002 = vadd.f32 %v911, 1.0
        %v1003 = vadd.f32 %v913, 1.0
        %v1004 = vadd.f32 %v915, 1.0
        %v1005 = vadd.f32 %v917, 1.0
        %v1006 = vadd.f32 %v919, 1.0
        %v1007 = vadd.f32 %v921, 1.0
        %v1008 = vadd.f32 %v923, 1.0
        %v1009 = vadd.f32 %v925, 1.0
        %v1010 = vadd.f32 %v927, 1.0
        %v1011 = vadd.f32 %v929, 1.0
        %v1012 = vadd.f32 %v931, 1.0
        %v1013 = vadd.f32 %v933, 1.0
        %v1014 = vadd.f32 %v935, 1.0
        %v1015 = vadd.f32 %v937, 1.0
        %v1016 = vadd.f32 %v939, 1.0
        %v1017 = vadd.f32 %v941, 1.0
        %v1018 = vadd.f32 %v943, 1.0
        %v1019 = vadd.f32 %v945, 1.0
        %v1020 = vadd.f32 %v947, 1.0
        %v1021 = vadd.f32 %v949, 1.0
        %v1022 = vadd.f32 %v951, 1.0
        %v1023 = vadd.f32 %v953, 1.0
        %v1024 = vadd.f32 %v955, 1.0
        %v1025 = vadd.f32 %v957, 1.0
        %v1026 = vadd.f32 %v959, 1.0
        %v1027 = vadd.f32 %v961, 1.0
        %v1028 = vadd.f32 %v963, 1.0
        %v1029 = vadd.f32 %v965, 1.0
        %v1030 = vrcp.pop %v966
        %v1031 = vrcp.pop %v967
        %v1032 = vrcp.pop %v968
        %v1033 = vrcp.pop %v969
        %v1034 = vrcp.pop %v970
        %v1035 = vrcp.pop %v971
        %v1036 = vrcp.pop %v972
        %v1037 = vrcp.pop %v973
        %v1038 = vrcp.pop %v974
        %v1039 = vrcp.pop %v975
        %v1040 = vrcp.pop %v976
        %v1041 = vrcp.pop %v977
        %v1042 = vrcp.pop %v978
        %v1043 = vrcp.pop %v979
        %v1044 = vrcp.pop %v980
        %v1045 = vrcp.pop %v981
        %v1046 = vrcp.pop %v982
        %v1047 = vrcp.pop %v983
        %v1048 = vrcp.pop %v984
        %v1049 = vrcp.pop %v985
        %v1050 = vrcp.pop %v986
        %v1051 = vrcp.pop %v987
        %v1052 = vrcp.pop %v988
        %v1053 = vrcp.pop %v989
        %v1054 = vrcp.pop %v990
        %v1055 = vrcp.pop %v991
        %v1056 = vrcp.pop %v992
        %v1057 = vrcp.pop %v993
        %v1058 = vrcp.pop %v994
        %v1059 = vrcp.pop %v995
        %v1060 = vrcp.pop %v996
        %v1061 = vrcp.pop %v997
        %v1062 = vrcp.pop %v998
        %v1063 = vrcp.pop %v999
        %v1064 = vrcp.pop %v1000
        %v1065 = vrcp.pop %v1001
        %v1066 = vrcp.pop %v1002
        %v1067 = vrcp.pop %v1003
        %v1068 = vrcp.pop %v1004
        %v1069 = vrcp.pop %v1005
        %v1070 = vrcp.pop %v1006
        %v1071 = vrcp.pop %v1007
        %v1072 = vrcp.pop %v1008
        %v1073 = vrcp.pop %v1009
        %v1074 = vrcp.pop %v1010
        %v1075 = vrcp.pop %v1011
        %v1076 = vrcp.pop %v1012
        %v1077 = vrcp.pop %v1013
        %v1078 = vrcp.pop %v1014
        %v1079 = vrcp.pop %v1015
        %v1080 = vrcp.pop %v1016
        %v1081 = vrcp.pop %v1017
        %v1082 = vrcp.pop %v1018
        %v1083 = vrcp.pop %v1019
        %v1084 = vrcp.pop %v1020
        %v1085 = vrcp.pop %v1021
        %v1086 = vrcp.pop %v1022
        %v1087 = vrcp.pop %v1023
        %v1088 = vrcp.pop %v1024
        %v1089 = vrcp.pop %v1025
        %v1090 = vrcp.pop %v1026
        %v1091 = vrcp.pop %v1027
        %v1092 = vrcp.pop %v1028
        %v1093 = vrcp.pop %v1029
        %v1094 = vld [vmem:[%s314] sm:$0xf]
        %v1095 = vld [vmem:[%s314 + $0x4] sm:$0xf]
        %v1096 = vld [vmem:[%s314 + $0x8] sm:$0xf]
        %v1097 = vld [vmem:[%s314 + $0xc] sm:$0xf]
        %v1098 = vld [vmem:[%s314 + $0x10] sm:$0xf]
        %v1099 = vld [vmem:[%s314 + $0x14] sm:$0xf]
        %v1100 = vld [vmem:[%s314 + $0x18] sm:$0xf]
        %v1101 = vld [vmem:[%s314 + $0x1c] sm:$0xf]
        %v1102 = vld [vmem:[%s314 + $0x20] sm:$0xf]
        %v1103 = vld [vmem:[%s314 + $0x24] sm:$0xf]
        %v1104 = vld [vmem:[%s314 + $0x28] sm:$0xf]
        %v1105 = vld [vmem:[%s314 + $0x2c] sm:$0xf]
        %v1106 = vld [vmem:[%s314 + $0x30] sm:$0xf]
        %v1107 = vld [vmem:[%s314 + $0x34] sm:$0xf]
        %v1108 = vld [vmem:[%s314 + $0x38] sm:$0xf]
        %v1109 = vld [vmem:[%s314 + $0x3c] sm:$0xf]
        %v1110 = vld [vmem:[%s314 + $0x40] sm:$0xf]
        %v1111 = vld [vmem:[%s314 + $0x44] sm:$0xf]
        %v1112 = vld [vmem:[%s314 + $0x48] sm:$0xf]
        %v1113 = vld [vmem:[%s314 + $0x4c] sm:$0xf]
        %v1114 = vld [vmem:[%s314 + $0x50] sm:$0xf]
        %v1115 = vld [vmem:[%s314 + $0x54] sm:$0xf]
        %v1116 = vld [vmem:[%s314 + $0x58] sm:$0xf]
        %v1117 = vld [vmem:[%s314 + $0x5c] sm:$0xf]
        %v1118 = vld [vmem:[%s314 + $0x60] sm:$0xf]
        %v1119 = vld [vmem:[%s314 + $0x64] sm:$0xf]
        %v1120 = vld [vmem:[%s314 + $0x68] sm:$0xf]
        %v1121 = vld [vmem:[%s314 + $0x6c] sm:$0xf]
        %v1122 = vld [vmem:[%s314 + $0x70] sm:$0xf]
        %v1123 = vld [vmem:[%s314 + $0x74] sm:$0xf]
        %v1124 = vld [vmem:[%s314 + $0x78] sm:$0xf]
        %v1125 = vld [vmem:[%s314 + $0x7c] sm:$0xf]
        %v1126 = vpack.c.bf16 %v1063, %v1062
        %v1127 = vpack.c.bf16 %v1065, %v1064
        %v1128 = vpack.c.bf16 %v1067, %v1066
        %v1129 = vpack.c.bf16 %v1069, %v1068
        %v1130 = vpack.c.bf16 %v1071, %v1070
        %v1131 = vpack.c.bf16 %v1073, %v1072
        %v1132 = vpack.c.bf16 %v1075, %v1074
        %v1133 = vpack.c.bf16 %v1077, %v1076
        %v1134 = vpack.c.bf16 %v1079, %v1078
        %v1135 = vpack.c.bf16 %v1081, %v1080
        %v1136 = vpack.c.bf16 %v1083, %v1082
        %v1137 = vpack.c.bf16 %v1085, %v1084
        %v1138 = vpack.c.bf16 %v1087, %v1086
        %v1139 = vpack.c.bf16 %v1089, %v1088
        %v1140 = vpack.c.bf16 %v1091, %v1090
        %v1141 = vpack.c.bf16 %v1093, %v1092
        %v1158 = vunpack.c.l.b16 %v1094
        %v1159 = vunpack.c.l.b16 %v1095
        %v1160 = vunpack.c.l.b16 %v1096
        %v1161 = vunpack.c.l.b16 %v1097
        %v1162 = vunpack.c.l.b16 %v1098
        %v1163 = vunpack.c.l.b16 %v1099
        %v1164 = vunpack.c.l.b16 %v1100
        %v1165 = vunpack.c.l.b16 %v1101
        %v1166 = vunpack.c.l.b16 %v1102
        %v1167 = vunpack.c.l.b16 %v1103
        %v1168 = vunpack.c.l.b16 %v1104
        %v1169 = vunpack.c.l.b16 %v1105
        %v1170 = vunpack.c.l.b16 %v1106
        %v1171 = vunpack.c.l.b16 %v1107
        %v1172 = vunpack.c.l.b16 %v1108
        %v1173 = vunpack.c.l.b16 %v1109
        %v1174 = vpack.c.b16 %v1159, %v1158
        %v1175 = vpack.c.b16 %v1161, %v1160
        %v1176 = vpack.c.b16 %v1163, %v1162
        %v1177 = vpack.c.b16 %v1165, %v1164
        %v1178 = vpack.c.b16 %v1167, %v1166
        %v1179 = vpack.c.b16 %v1169, %v1168
        %v1180 = vpack.c.b16 %v1171, %v1170
        %v1181 = vpack.c.b16 %v1173, %v1172
        %1190 = vmatprep.subr.bf16.mxu0 0
        %1191 = vmatpush1.bf16.msra.mxu0 %v1126
        %1192 = vmatprep.subr.bf16.mxu0 0
        %1193 = vmatpush1.bf16.msra.mxu0 %v1127
        %1194 = vmatprep.subr.bf16.mxu0 0
        %1195 = vmatpush1.bf16.msra.mxu0 %v1128
        %1196 = vmatprep.subr.bf16.mxu0 0
        %1197 = vmatpush1.bf16.msra.mxu0 %v1129
        %1198 = vmatprep.subr.bf16.mxu0 0
        %1199 = vmatpush1.bf16.msra.mxu0 %v1130
        %1200 = vmatprep.subr.bf16.mxu0 0
        %1201 = vmatpush1.bf16.msra.mxu0 %v1131
        %1202 = vmatprep.subr.bf16.mxu0 0
        %1203 = vmatpush1.bf16.msra.mxu0 %v1132
        %1204 = vmatprep.subr.bf16.mxu0 0
        %1205 = vmatpush1.bf16.msra.mxu0 %v1133
        %1206 = vmatprep.subr.bf16.mxu0 0
        %1207 = vmatpush1.bf16.msra.mxu0 0
        %1208 = vmatprep.subr.bf16.mxu0 0
        %1209 = vmatpush1.bf16.msra.mxu0 0
        %1210 = vmatprep.subr.bf16.mxu0 0
        %1211 = vmatpush1.bf16.msra.mxu0 0
        %1212 = vmatprep.subr.bf16.mxu0 0
        %1213 = vmatpush1.bf16.msra.mxu0 0
        %1214 = vmatprep.subr.bf16.mxu0 0
        %1215 = vmatpush1.bf16.msra.mxu0 0
        %1216 = vmatprep.subr.bf16.mxu0 0
        %1217 = vmatpush1.bf16.msra.mxu0 0
        %1218 = vmatprep.subr.bf16.mxu0 0
        %1219 = vmatpush1.bf16.msra.mxu0 0
        %1220 = vmatprep.subr.bf16.mxu0 0
        %1221 = vmatpush1.bf16.msra.mxu0 0
        %1222 = vmatprep.mubr.bf16.mxu0 0
        %1223 = vmatmul.mubr.bf16.gmra.mrb[0].mxu0 %v1174
        %v1224 = vpop.f32.mrb[0].mxu0
        %v1225 = vadd.f32 0.0, %v1224
        %v1226 = vpop.f32.mrb[0].mxu0
        %v1227 = vpop.f32.mrb[0].mxu0
        %v1228 = vadd.f32 0.0, %v1227
        %v1229 = vpop.f32.mrb[0].mxu0
        %1230 = vmatprep.mubr.bf16.mxu0 0
        %1231 = vmatmul.mubr.bf16.gmra.mrb[0].mxu0 %v1175
        %v1232 = vpop.f32.mrb[0].mxu0
        %v1233 = vadd.f32 0.0, %v1232
        %v1234 = vpop.f32.mrb[0].mxu0
        %v1235 = vpop.f32.mrb[0].mxu0
        %v1236 = vadd.f32 0.0, %v1235
        %v1237 = vpop.f32.mrb[0].mxu0
        %1238 = vmatprep.mubr.bf16.mxu0 0
        %1239 = vmatmul.mubr.bf16.gmra.mrb[0].mxu0 %v1176
        %v1240 = vpop.f32.mrb[0].mxu0
        %v1241 = vadd.f32 0.0, %v1240
        %v1242 = vpop.f32.mrb[0].mxu0
        %v1243 = vpop.f32.mrb[0].mxu0
        %v1244 = vadd.f32 0.0, %v1243
        %v1245 = vpop.f32.mrb[0].mxu0
        %1246 = vmatprep.mubr.bf16.mxu0 0
        %1247 = vmatmul.mubr.bf16.gmra.mrb[0].mxu0 %v1177
        %v1248 = vpop.f32.mrb[0].mxu0
        %v1249 = vadd.f32 0.0, %v1248
        %v1250 = vpop.f32.mrb[0].mxu0
        %v1251 = vpop.f32.mrb[0].mxu0
        %v1252 = vadd.f32 0.0, %v1251
        %v1253 = vpop.f32.mrb[0].mxu0
        %1254 = vmatprep.mubr.bf16.mxu0 0
        %1255 = vmatmul.mubr.bf16.gmra.mrb[0].mxu0 %v1178
        %v1256 = vpop.f32.mrb[0].mxu0
        %v1257 = vadd.f32 0.0, %v1256
        %v1258 = vpop.f32.mrb[0].mxu0
        %v1259 = vpop.f32.mrb[0].mxu0
        %v1260 = vadd.f32 0.0, %v1259
        %v1261 = vpop.f32.mrb[0].mxu0
        %1262 = vmatprep.mubr.bf16.mxu0 0
        %1263 = vmatmul.mubr.bf16.gmra.mrb[0].mxu0 %v1179
        %v1264 = vpop.f32.mrb[0].mxu0
        %v1265 = vadd.f32 0.0, %v1264
        %v1266 = vpop.f32.mrb[0].mxu0
        %v1267 = vpop.f32.mrb[0].mxu0
        %v1268 = vadd.f32 0.0, %v1267
        %v1269 = vpop.f32.mrb[0].mxu0
        %1270 = vmatprep.mubr.bf16.mxu0 0
        %1271 = vmatmul.mubr.bf16.gmra.mrb[0].mxu0 %v1180
        %v1272 = vpop.f32.mrb[0].mxu0
        %v1273 = vadd.f32 0.0, %v1272
        %v1274 = vpop.f32.mrb[0].mxu0
        %v1275 = vpop.f32.mrb[0].mxu0
        %v1276 = vadd.f32 0.0, %v1275
        %v1277 = vpop.f32.mrb[0].mxu0
        %1278 = vmatprep.mubr.bf16.mxu0 0
        %1279 = vmatmul.mubr.bf16.gmra.mrb[0].mxu0 %v1181
        %v1280 = vpop.f32.mrb[0].mxu0
        %v1281 = vadd.f32 0.0, %v1280
        %v1282 = vpop.f32.mrb[0].mxu0
        %v1283 = vpop.f32.mrb[0].mxu0
        %v1284 = vadd.f32 0.0, %v1283
        %v1285 = vpop.f32.mrb[0].mxu0
        %1286 = vdwg.mxu0
        %v1303 = vunpack.c.l.b16 %v1110
        %v1304 = vunpack.c.l.b16 %v1111
        %v1305 = vunpack.c.l.b16 %v1112
        %v1306 = vunpack.c.l.b16 %v1113
        %v1307 = vunpack.c.l.b16 %v1114
        %v1308 = vunpack.c.l.b16 %v1115
        %v1309 = vunpack.c.l.b16 %v1116
        %v1310 = vunpack.c.l.b16 %v1117
        %v1311 = vunpack.c.l.b16 %v1118
        %v1312 = vunpack.c.l.b16 %v1119
        %v1313 = vunpack.c.l.b16 %v1120
        %v1314 = vunpack.c.l.b16 %v1121
        %v1315 = vunpack.c.l.b16 %v1122
        %v1316 = vunpack.c.l.b16 %v1123
        %v1317 = vunpack.c.l.b16 %v1124
        %v1318 = vunpack.c.l.b16 %v1125
        %v1319 = vpack.c.b16 %v1304, %v1303
        %v1320 = vpack.c.b16 %v1306, %v1305
        %v1321 = vpack.c.b16 %v1308, %v1307
        %v1322 = vpack.c.b16 %v1310, %v1309
        %v1323 = vpack.c.b16 %v1312, %v1311
        %v1324 = vpack.c.b16 %v1314, %v1313
        %v1325 = vpack.c.b16 %v1316, %v1315
        %v1326 = vpack.c.b16 %v1318, %v1317
        %1335 = vmatprep.subr.bf16.mxu0 0
        %1336 = vmatpush1.bf16.msra.mxu0 %v1134
        %1337 = vmatprep.subr.bf16.mxu0 0
        %1338 = vmatpush1.bf16.msra.mxu0 %v1135
        %1339 = vmatprep.subr.bf16.mxu0 0
        %1340 = vmatpush1.bf16.msra.mxu0 %v1136
        %1341 = vmatprep.subr.bf16.mxu0 0
        %1342 = vmatpush1.bf16.msra.mxu0 %v1137
        %1343 = vmatprep.subr.bf16.mxu0 0
        %1344 = vmatpush1.bf16.msra.mxu0 %v1138
        %1345 = vmatprep.subr.bf16.mxu0 0
        %1346 = vmatpush1.bf16.msra.mxu0 %v1139
        %1347 = vmatprep.subr.bf16.mxu0 0
        %1348 = vmatpush1.bf16.msra.mxu0 %v1140
        %1349 = vmatprep.subr.bf16.mxu0 0
        %1350 = vmatpush1.bf16.msra.mxu0 %v1141
        %1351 = vmatprep.subr.bf16.mxu0 0
        %1352 = vmatpush1.bf16.msra.mxu0 0
        %1353 = vmatprep.subr.bf16.mxu0 0
        %1354 = vmatpush1.bf16.msra.mxu0 0
        %1355 = vmatprep.subr.bf16.mxu0 0
        %1356 = vmatpush1.bf16.msra.mxu0 0
        %1357 = vmatprep.subr.bf16.mxu0 0
        %1358 = vmatpush1.bf16.msra.mxu0 0
        %1359 = vmatprep.subr.bf16.mxu0 0
        %1360 = vmatpush1.bf16.msra.mxu0 0
        %1361 = vmatprep.subr.bf16.mxu0 0
        %1362 = vmatpush1.bf16.msra.mxu0 0
        %1363 = vmatprep.subr.bf16.mxu0 0
        %1364 = vmatpush1.bf16.msra.mxu0 0
        %1365 = vmatprep.subr.bf16.mxu0 0
        %1366 = vmatpush1.bf16.msra.mxu0 0
        %1367 = vmatprep.mubr.bf16.mxu0 0
        %1368 = vmatmul.mubr.bf16.gmra.mrb[0].mxu0 %v1319
        %v1369 = vpop.f32.mrb[0].mxu0
        %v1370 = vadd.f32 0.0, %v1369
        %v1371 = vpop.f32.mrb[0].mxu0
        %v1372 = vpop.f32.mrb[0].mxu0
        %v1373 = vadd.f32 0.0, %v1372
        %v1374 = vpop.f32.mrb[0].mxu0
        %1375 = vmatprep.mubr.bf16.mxu0 0
        %1376 = vmatmul.mubr.bf16.gmra.mrb[0].mxu0 %v1320
        %v1377 = vpop.f32.mrb[0].mxu0
        %v1378 = vadd.f32 0.0, %v1377
        %v1379 = vpop.f32.mrb[0].mxu0
        %v1380 = vpop.f32.mrb[0].mxu0
        %v1381 = vadd.f32 0.0, %v1380
        %v1382 = vpop.f32.mrb[0].mxu0
        %1383 = vmatprep.mubr.bf16.mxu0 0
        %1384 = vmatmul.mubr.bf16.gmra.mrb[0].mxu0 %v1321
        %v1385 = vpop.f32.mrb[0].mxu0
        %v1386 = vadd.f32 0.0, %v1385
        %v1387 = vpop.f32.mrb[0].mxu0
        %v1388 = vpop.f32.mrb[0].mxu0
        %v1389 = vadd.f32 0.0, %v1388
        %v1390 = vpop.f32.mrb[0].mxu0
        %1391 = vmatprep.mubr.bf16.mxu0 0
        %1392 = vmatmul.mubr.bf16.gmra.mrb[0].mxu0 %v1322
        %v1393 = vpop.f32.mrb[0].mxu0
        %v1394 = vadd.f32 0.0, %v1393
        %v1395 = vpop.f32.mrb[0].mxu0
        %v1396 = vpop.f32.mrb[0].mxu0
        %v1397 = vadd.f32 0.0, %v1396
        %v1398 = vpop.f32.mrb[0].mxu0
        %1399 = vmatprep.mubr.bf16.mxu0 0
        %1400 = vmatmul.mubr.bf16.gmra.mrb[0].mxu0 %v1323
        %v1401 = vpop.f32.mrb[0].mxu0
        %v1402 = vadd.f32 0.0, %v1401
        %v1403 = vpop.f32.mrb[0].mxu0
        %v1404 = vpop.f32.mrb[0].mxu0
        %v1405 = vadd.f32 0.0, %v1404
        %v1406 = vpop.f32.mrb[0].mxu0
        %1407 = vmatprep.mubr.bf16.mxu0 0
        %1408 = vmatmul.mubr.bf16.gmra.mrb[0].mxu0 %v1324
        %v1409 = vpop.f32.mrb[0].mxu0
        %v1410 = vadd.f32 0.0, %v1409
        %v1411 = vpop.f32.mrb[0].mxu0
        %v1412 = vpop.f32.mrb[0].mxu0
        %v1413 = vadd.f32 0.0, %v1412
        %v1414 = vpop.f32.mrb[0].mxu0
        %1415 = vmatprep.mubr.bf16.mxu0 0
        %1416 = vmatmul.mubr.bf16.gmra.mrb[0].mxu0 %v1325
        %v1417 = vpop.f32.mrb[0].mxu0
        %v1418 = vadd.f32 0.0, %v1417
        %v1419 = vpop.f32.mrb[0].mxu0
        %v1420 = vpop.f32.mrb[0].mxu0
        %v1421 = vadd.f32 0.0, %v1420
        %v1422 = vpop.f32.mrb[0].mxu0
        %1423 = vmatprep.mubr.bf16.mxu0 0
        %1424 = vmatmul.mubr.bf16.gmra.mrb[0].mxu0 %v1326
        %v1425 = vpop.f32.mrb[0].mxu0
        %v1426 = vadd.f32 0.0, %v1425
        %v1427 = vpop.f32.mrb[0].mxu0
        %v1428 = vpop.f32.mrb[0].mxu0
        %v1429 = vadd.f32 0.0, %v1428
        %v1430 = vpop.f32.mrb[0].mxu0
        %1431 = vdwg.mxu0
        %v1432 = vld [vmem:[%s307] sm:$0xff]
        %v1433 = vld [vmem:[%s307 + $0x8] sm:$0xff]
        %v1434 = vld [vmem:[%s307 + $0x10] sm:$0xff]
        %v1435 = vld [vmem:[%s307 + $0x18] sm:$0xff]
        %v1436 = vld [vmem:[%s307 + $0x20] sm:$0xff]
        %v1437 = vld [vmem:[%s307 + $0x28] sm:$0xff]
        %v1438 = vld [vmem:[%s307 + $0x30] sm:$0xff]
        %v1439 = vld [vmem:[%s307 + $0x38] sm:$0xff]
        %v1440 = vld [vmem:[%s307 + $0x40] sm:$0xff]
        %v1441 = vld [vmem:[%s307 + $0x48] sm:$0xff]
        %v1442 = vld [vmem:[%s307 + $0x50] sm:$0xff]
        %v1443 = vld [vmem:[%s307 + $0x58] sm:$0xff]
        %v1444 = vld [vmem:[%s307 + $0x60] sm:$0xff]
        %v1445 = vld [vmem:[%s307 + $0x68] sm:$0xff]
        %v1446 = vld [vmem:[%s307 + $0x70] sm:$0xff]
        %v1447 = vld [vmem:[%s307 + $0x78] sm:$0xff]
        %v1448 = vld [vmem:[%s307 + $0x80] sm:$0xff]
        %v1449 = vld [vmem:[%s307 + $0x88] sm:$0xff]
        %v1450 = vld [vmem:[%s307 + $0x90] sm:$0xff]
        %v1451 = vld [vmem:[%s307 + $0x98] sm:$0xff]
        %v1452 = vld [vmem:[%s307 + $0xa0] sm:$0xff]
        %v1453 = vld [vmem:[%s307 + $0xa8] sm:$0xff]
        %v1454 = vld [vmem:[%s307 + $0xb0] sm:$0xff]
        %v1455 = vld [vmem:[%s307 + $0xb8] sm:$0xff]
        %v1456 = vld [vmem:[%s307 + $0xc0] sm:$0xff]
        %v1457 = vld [vmem:[%s307 + $0xc8] sm:$0xff]
        %v1458 = vld [vmem:[%s307 + $0xd0] sm:$0xff]
        %v1459 = vld [vmem:[%s307 + $0xd8] sm:$0xff]
        %v1460 = vld [vmem:[%s307 + $0xe0] sm:$0xff]
        %v1461 = vld [vmem:[%s307 + $0xe8] sm:$0xff]
        %v1462 = vld [vmem:[%s307 + $0xf0] sm:$0xff]
        %v1463 = vld [vmem:[%s307 + $0xf8] sm:$0xff]
        %v1464 = vsub.f32 0.0, %v1432
        %v1465 = vsub.f32 0.0, %v1433
        %v1466 = vsub.f32 0.0, %v1434
        %v1467 = vsub.f32 0.0, %v1435
        %v1468 = vsub.f32 0.0, %v1436
        %v1469 = vsub.f32 0.0, %v1437
        %v1470 = vsub.f32 0.0, %v1438
        %v1471 = vsub.f32 0.0, %v1439
        %v1472 = vsub.f32 0.0, %v1440
        %v1473 = vsub.f32 0.0, %v1441
        %v1474 = vsub.f32 0.0, %v1442
        %v1475 = vsub.f32 0.0, %v1443
        %v1476 = vsub.f32 0.0, %v1444
        %v1477 = vsub.f32 0.0, %v1445
        %v1478 = vsub.f32 0.0, %v1446
        %v1479 = vsub.f32 0.0, %v1447
        %v1480 = vsub.f32 0.0, %v1448
        %v1481 = vsub.f32 0.0, %v1449
        %v1482 = vsub.f32 0.0, %v1450
        %v1483 = vsub.f32 0.0, %v1451
        %v1484 = vsub.f32 0.0, %v1452
        %v1485 = vsub.f32 0.0, %v1453
        %v1486 = vsub.f32 0.0, %v1454
        %v1487 = vsub.f32 0.0, %v1455
        %v1488 = vsub.f32 0.0, %v1456
        %v1489 = vsub.f32 0.0, %v1457
        %v1490 = vsub.f32 0.0, %v1458
        %v1491 = vsub.f32 0.0, %v1459
        %v1492 = vsub.f32 0.0, %v1460
        %v1493 = vsub.f32 0.0, %v1461
        %v1494 = vsub.f32 0.0, %v1462
        %v1495 = vsub.f32 0.0, %v1463
        %v1496 = vmul.f32 %v1225, %v1030
        %v1497 = vmul.f32 %v1228, %v1031
        %v1498 = vmul.f32 %v1233, %v1032
        %v1499 = vmul.f32 %v1236, %v1033
        %v1500 = vmul.f32 %v1241, %v1034
        %v1501 = vmul.f32 %v1244, %v1035
        %v1502 = vmul.f32 %v1249, %v1036
        %v1503 = vmul.f32 %v1252, %v1037
        %v1504 = vmul.f32 %v1257, %v1038
        %v1505 = vmul.f32 %v1260, %v1039
        %v1506 = vmul.f32 %v1265, %v1040
        %v1507 = vmul.f32 %v1268, %v1041
        %v1508 = vmul.f32 %v1273, %v1042
        %v1509 = vmul.f32 %v1276, %v1043
        %v1510 = vmul.f32 %v1281, %v1044
        %v1511 = vmul.f32 %v1284, %v1045
        %v1512 = vmul.f32 %v1370, %v1046
        %v1513 = vmul.f32 %v1373, %v1047
        %v1514 = vmul.f32 %v1378, %v1048
        %v1515 = vmul.f32 %v1381, %v1049
        %v1516 = vmul.f32 %v1386, %v1050
        %v1517 = vmul.f32 %v1389, %v1051
        %v1518 = vmul.f32 %v1394, %v1052
        %v1519 = vmul.f32 %v1397, %v1053
        %v1520 = vmul.f32 %v1402, %v1054
        %v1521 = vmul.f32 %v1405, %v1055
        %v1522 = vmul.f32 %v1410, %v1056
        %v1523 = vmul.f32 %v1413, %v1057
        %v1524 = vmul.f32 %v1418, %v1058
        %v1525 = vmul.f32 %v1421, %v1059
        %v1526 = vmul.f32 %v1426, %v1060
        %v1527 = vmul.f32 %v1429, %v1061
        %1529 = vset.pattern.permute.xlu0 0
        %1530 = vperm.xlu0 %1529, %v1464
        %v1531 = vpop.permute.xlu0 %1530
        %1534 = vset.pattern.permute.xlu0 0
        %1535 = vperm.xlu0 %1534, %v1465
        %v1536 = vpop.permute.xlu0 %1535
        %1539 = vset.pattern.permute.xlu0 0
        %1540 = vperm.xlu0 %1539, %v1466
        %v1541 = vpop.permute.xlu0 %1540
        %1544 = vset.pattern.permute.xlu0 0
        %1545 = vperm.xlu0 %1544, %v1467
        %v1546 = vpop.permute.xlu0 %1545
        %1549 = vset.pattern.permute.xlu0 0
        %1550 = vperm.xlu0 %1549, %v1468
        %v1551 = vpop.permute.xlu0 %1550
        %1554 = vset.pattern.permute.xlu0 0
        %1555 = vperm.xlu0 %1554, %v1469
        %v1556 = vpop.permute.xlu0 %1555
        %1559 = vset.pattern.permute.xlu0 0
        %1560 = vperm.xlu0 %1559, %v1470
        %v1561 = vpop.permute.xlu0 %1560
        %1564 = vset.pattern.permute.xlu0 0
        %1565 = vperm.xlu0 %1564, %v1471
        %v1566 = vpop.permute.xlu0 %1565
        %1569 = vset.pattern.permute.xlu0 0
        %1570 = vperm.xlu0 %1569, %v1472
        %v1571 = vpop.permute.xlu0 %1570
        %1574 = vset.pattern.permute.xlu0 0
        %1575 = vperm.xlu0 %1574, %v1473
        %v1576 = vpop.permute.xlu0 %1575
        %1579 = vset.pattern.permute.xlu0 0
        %1580 = vperm.xlu0 %1579, %v1474
        %v1581 = vpop.permute.xlu0 %1580
        %1584 = vset.pattern.permute.xlu0 0
        %1585 = vperm.xlu0 %1584, %v1475
        %v1586 = vpop.permute.xlu0 %1585
        %1589 = vset.pattern.permute.xlu0 0
        %1590 = vperm.xlu0 %1589, %v1476
        %v1591 = vpop.permute.xlu0 %1590
        %1594 = vset.pattern.permute.xlu0 0
        %1595 = vperm.xlu0 %1594, %v1477
        %v1596 = vpop.permute.xlu0 %1595
        %1599 = vset.pattern.permute.xlu0 0
        %1600 = vperm.xlu0 %1599, %v1478
        %v1601 = vpop.permute.xlu0 %1600
        %1604 = vset.pattern.permute.xlu0 0
        %1605 = vperm.xlu0 %1604, %v1479
        %v1606 = vpop.permute.xlu0 %1605
        %1609 = vset.pattern.permute.xlu0 0
        %1610 = vperm.xlu0 %1609, %v1480
        %v1611 = vpop.permute.xlu0 %1610
        %1614 = vset.pattern.permute.xlu0 0
        %1615 = vperm.xlu0 %1614, %v1481
        %v1616 = vpop.permute.xlu0 %1615
        %1619 = vset.pattern.permute.xlu0 0
        %1620 = vperm.xlu0 %1619, %v1482
        %v1621 = vpop.permute.xlu0 %1620
        %1624 = vset.pattern.permute.xlu0 0
        %1625 = vperm.xlu0 %1624, %v1483
        %v1626 = vpop.permute.xlu0 %1625
        %1629 = vset.pattern.permute.xlu0 0
        %1630 = vperm.xlu0 %1629, %v1484
        %v1631 = vpop.permute.xlu0 %1630
        %1634 = vset.pattern.permute.xlu0 0
        %1635 = vperm.xlu0 %1634, %v1485
        %v1636 = vpop.permute.xlu0 %1635
        %1639 = vset.pattern.permute.xlu0 0
        %1640 = vperm.xlu0 %1639, %v1486
        %v1641 = vpop.permute.xlu0 %1640
        %1644 = vset.pattern.permute.xlu0 0
        %1645 = vperm.xlu0 %1644, %v1487
        %v1646 = vpop.permute.xlu0 %1645
        %1649 = vset.pattern.permute.xlu0 0
        %1650 = vperm.xlu0 %1649, %v1488
        %v1651 = vpop.permute.xlu0 %1650
        %1654 = vset.pattern.permute.xlu0 0
        %1655 = vperm.xlu0 %1654, %v1489
        %v1656 = vpop.permute.xlu0 %1655
        %1659 = vset.pattern.permute.xlu0 0
        %1660 = vperm.xlu0 %1659, %v1490
        %v1661 = vpop.permute.xlu0 %1660
        %1664 = vset.pattern.permute.xlu0 0
        %1665 = vperm.xlu0 %1664, %v1491
        %v1666 = vpop.permute.xlu0 %1665
        %1669 = vset.pattern.permute.xlu0 0
        %1670 = vperm.xlu0 %1669, %v1492
        %v1671 = vpop.permute.xlu0 %1670
        %1674 = vset.pattern.permute.xlu0 0
        %1675 = vperm.xlu0 %1674, %v1493
        %v1676 = vpop.permute.xlu0 %1675
        %1679 = vset.pattern.permute.xlu0 0
        %1680 = vperm.xlu0 %1679, %v1494
        %v1681 = vpop.permute.xlu0 %1680
        %1684 = vset.pattern.permute.xlu0 0
        %1685 = vperm.xlu0 %1684, %v1495
        %v1686 = vpop.permute.xlu0 %1685
        %v1688 = vmul.f32 %v1531, %v1496
        %v1689 = vmul.f32 %v1536, %v1497
        %v1690 = vmul.f32 %v1541, %v1498
        %v1691 = vmul.f32 %v1546, %v1499
        %v1692 = vmul.f32 %v1551, %v1500
        %v1693 = vmul.f32 %v1556, %v1501
        %v1694 = vmul.f32 %v1561, %v1502
        %v1695 = vmul.f32 %v1566, %v1503
        %v1696 = vmul.f32 %v1571, %v1504
        %v1697 = vmul.f32 %v1576, %v1505
        %v1698 = vmul.f32 %v1581, %v1506
        %v1699 = vmul.f32 %v1586, %v1507
        %v1700 = vmul.f32 %v1591, %v1508
        %v1701 = vmul.f32 %v1596, %v1509
        %v1702 = vmul.f32 %v1601, %v1510
        %v1703 = vmul.f32 %v1606, %v1511
        %v1704 = vmul.f32 %v1611, %v1512
        %v1705 = vmul.f32 %v1616, %v1513
        %v1706 = vmul.f32 %v1621, %v1514
        %v1707 = vmul.f32 %v1626, %v1515
        %v1708 = vmul.f32 %v1631, %v1516
        %v1709 = vmul.f32 %v1636, %v1517
        %v1710 = vmul.f32 %v1641, %v1518
        %v1711 = vmul.f32 %v1646, %v1519
        %v1712 = vmul.f32 %v1651, %v1520
        %v1713 = vmul.f32 %v1656, %v1521
        %v1714 = vmul.f32 %v1661, %v1522
        %v1715 = vmul.f32 %v1666, %v1523
        %v1716 = vmul.f32 %v1671, %v1524
        %v1717 = vmul.f32 %v1676, %v1525
        %v1718 = vmul.f32 %v1681, %v1526
        %v1719 = vmul.f32 %v1686, %v1527
        %1721 = vset.pattern.permute.xlu0 1
        %1722 = vperm.xlu0 %1721, %v1432
        %v1723 = vpop.permute.xlu0 %1722
        %1726 = vset.pattern.permute.xlu0 1
        %1727 = vperm.xlu0 %1726, %v1433
        %v1728 = vpop.permute.xlu0 %1727
        %1731 = vset.pattern.permute.xlu0 1
        %1732 = vperm.xlu0 %1731, %v1434
        %v1733 = vpop.permute.xlu0 %1732
        %1736 = vset.pattern.permute.xlu0 1
        %1737 = vperm.xlu0 %1736, %v1435
        %v1738 = vpop.permute.xlu0 %1737
        %1741 = vset.pattern.permute.xlu0 1
        %1742 = vperm.xlu0 %1741, %v1436
        %v1743 = vpop.permute.xlu0 %1742
        %1746 = vset.pattern.permute.xlu0 1
        %1747 = vperm.xlu0 %1746, %v1437
        %v1748 = vpop.permute.xlu0 %1747
        %1751 = vset.pattern.permute.xlu0 1
        %1752 = vperm.xlu0 %1751, %v1438
        %v1753 = vpop.permute.xlu0 %1752
        %1756 = vset.pattern.permute.xlu0 1
        %1757 = vperm.xlu0 %1756, %v1439
        %v1758 = vpop.permute.xlu0 %1757
        %1761 = vset.pattern.permute.xlu0 1
        %1762 = vperm.xlu0 %1761, %v1440
        %v1763 = vpop.permute.xlu0 %1762
        %1766 = vset.pattern.permute.xlu0 1
        %1767 = vperm.xlu0 %1766, %v1441
        %v1768 = vpop.permute.xlu0 %1767
        %1771 = vset.pattern.permute.xlu0 1
        %1772 = vperm.xlu0 %1771, %v1442
        %v1773 = vpop.permute.xlu0 %1772
        %1776 = vset.pattern.permute.xlu0 1
        %1777 = vperm.xlu0 %1776, %v1443
        %v1778 = vpop.permute.xlu0 %1777
        %1781 = vset.pattern.permute.xlu0 1
        %1782 = vperm.xlu0 %1781, %v1444
        %v1783 = vpop.permute.xlu0 %1782
        %1786 = vset.pattern.permute.xlu0 1
        %1787 = vperm.xlu0 %1786, %v1445
        %v1788 = vpop.permute.xlu0 %1787
        %1791 = vset.pattern.permute.xlu0 1
        %1792 = vperm.xlu0 %1791, %v1446
        %v1793 = vpop.permute.xlu0 %1792
        %1796 = vset.pattern.permute.xlu0 1
        %1797 = vperm.xlu0 %1796, %v1447
        %v1798 = vpop.permute.xlu0 %1797
        %1801 = vset.pattern.permute.xlu0 1
        %1802 = vperm.xlu0 %1801, %v1448
        %v1803 = vpop.permute.xlu0 %1802
        %1806 = vset.pattern.permute.xlu0 1
        %1807 = vperm.xlu0 %1806, %v1449
        %v1808 = vpop.permute.xlu0 %1807
        %1811 = vset.pattern.permute.xlu0 1
        %1812 = vperm.xlu0 %1811, %v1450
        %v1813 = vpop.permute.xlu0 %1812
        %1816 = vset.pattern.permute.xlu0 1
        %1817 = vperm.xlu0 %1816, %v1451
        %v1818 = vpop.permute.xlu0 %1817
        %1821 = vset.pattern.permute.xlu0 1
        %1822 = vperm.xlu0 %1821, %v1452
        %v1823 = vpop.permute.xlu0 %1822
        %1826 = vset.pattern.permute.xlu0 1
        %1827 = vperm.xlu0 %1826, %v1453
        %v1828 = vpop.permute.xlu0 %1827
        %1831 = vset.pattern.permute.xlu0 1
        %1832 = vperm.xlu0 %1831, %v1454
        %v1833 = vpop.permute.xlu0 %1832
        %1836 = vset.pattern.permute.xlu0 1
        %1837 = vperm.xlu0 %1836, %v1455
        %v1838 = vpop.permute.xlu0 %1837
        %1841 = vset.pattern.permute.xlu0 1
        %1842 = vperm.xlu0 %1841, %v1456
        %v1843 = vpop.permute.xlu0 %1842
        %1846 = vset.pattern.permute.xlu0 1
        %1847 = vperm.xlu0 %1846, %v1457
        %v1848 = vpop.permute.xlu0 %1847
        %1851 = vset.pattern.permute.xlu0 1
        %1852 = vperm.xlu0 %1851, %v1458
        %v1853 = vpop.permute.xlu0 %1852
        %1856 = vset.pattern.permute.xlu0 1
        %1857 = vperm.xlu0 %1856, %v1459
        %v1858 = vpop.permute.xlu0 %1857
        %1861 = vset.pattern.permute.xlu0 1
        %1862 = vperm.xlu0 %1861, %v1460
        %v1863 = vpop.permute.xlu0 %1862
        %1866 = vset.pattern.permute.xlu0 1
        %1867 = vperm.xlu0 %1866, %v1461
        %v1868 = vpop.permute.xlu0 %1867
        %1871 = vset.pattern.permute.xlu0 1
        %1872 = vperm.xlu0 %1871, %v1462
        %v1873 = vpop.permute.xlu0 %1872
        %1876 = vset.pattern.permute.xlu0 1
        %1877 = vperm.xlu0 %1876, %v1463
        %v1878 = vpop.permute.xlu0 %1877
        %v1880 = vmul.f32 %v1723, %v1062
        %v1881 = vmul.f32 %v1728, %v1063
        %v1882 = vmul.f32 %v1733, %v1064
        %v1883 = vmul.f32 %v1738, %v1065
        %v1884 = vmul.f32 %v1743, %v1066
        %v1885 = vmul.f32 %v1748, %v1067
        %v1886 = vmul.f32 %v1753, %v1068
        %v1887 = vmul.f32 %v1758, %v1069
        %v1888 = vmul.f32 %v1763, %v1070
        %v1889 = vmul.f32 %v1768, %v1071
        %v1890 = vmul.f32 %v1773, %v1072
        %v1891 = vmul.f32 %v1778, %v1073
        %v1892 = vmul.f32 %v1783, %v1074
        %v1893 = vmul.f32 %v1788, %v1075
        %v1894 = vmul.f32 %v1793, %v1076
        %v1895 = vmul.f32 %v1798, %v1077
        %v1896 = vmul.f32 %v1803, %v1078
        %v1897 = vmul.f32 %v1808, %v1079
        %v1898 = vmul.f32 %v1813, %v1080
        %v1899 = vmul.f32 %v1818, %v1081
        %v1900 = vmul.f32 %v1823, %v1082
        %v1901 = vmul.f32 %v1828, %v1083
        %v1902 = vmul.f32 %v1833, %v1084
        %v1903 = vmul.f32 %v1838, %v1085
        %v1904 = vmul.f32 %v1843, %v1086
        %v1905 = vmul.f32 %v1848, %v1087
        %v1906 = vmul.f32 %v1853, %v1088
        %v1907 = vmul.f32 %v1858, %v1089
        %v1908 = vmul.f32 %v1863, %v1090
        %v1909 = vmul.f32 %v1868, %v1091
        %v1910 = vmul.f32 %v1873, %v1092
        %v1911 = vmul.f32 %v1878, %v1093
        %1912 = vst [vmem:[%s301] sm:$0xff] %v1688
        %1913 = vst [vmem:[%s301 + $0x8] sm:$0xff] %v1689
        %1914 = vst [vmem:[%s301 + $0x10] sm:$0xff] %v1690
        %1915 = vst [vmem:[%s301 + $0x18] sm:$0xff] %v1691
        %1916 = vst [vmem:[%s301 + $0x20] sm:$0xff] %v1692
        %1917 = vst [vmem:[%s301 + $0x28] sm:$0xff] %v1693
        %1918 = vst [vmem:[%s301 + $0x30] sm:$0xff] %v1694
        %1919 = vst [vmem:[%s301 + $0x38] sm:$0xff] %v1695
        %1920 = vst [vmem:[%s301 + $0x40] sm:$0xff] %v1696
        %1921 = vst [vmem:[%s301 + $0x48] sm:$0xff] %v1697
        %1922 = vst [vmem:[%s301 + $0x50] sm:$0xff] %v1698
        %1923 = vst [vmem:[%s301 + $0x58] sm:$0xff] %v1699
        %1924 = vst [vmem:[%s301 + $0x60] sm:$0xff] %v1700
        %1925 = vst [vmem:[%s301 + $0x68] sm:$0xff] %v1701
        %1926 = vst [vmem:[%s301 + $0x70] sm:$0xff] %v1702
        %1927 = vst [vmem:[%s301 + $0x78] sm:$0xff] %v1703
        %1928 = vst [vmem:[%s301 + $0x80] sm:$0xff] %v1704
        %1929 = vst [vmem:[%s301 + $0x88] sm:$0xff] %v1705
        %1930 = vst [vmem:[%s301 + $0x90] sm:$0xff] %v1706
        %1931 = vst [vmem:[%s301 + $0x98] sm:$0xff] %v1707
        %1932 = vst [vmem:[%s301 + $0xa0] sm:$0xff] %v1708
        %1933 = vst [vmem:[%s301 + $0xa8] sm:$0xff] %v1709
        %1934 = vst [vmem:[%s301 + $0xb0] sm:$0xff] %v1710
        %1935 = vst [vmem:[%s301 + $0xb8] sm:$0xff] %v1711
        %1936 = vst [vmem:[%s301 + $0xc0] sm:$0xff] %v1712
        %1937 = vst [vmem:[%s301 + $0xc8] sm:$0xff] %v1713
        %1938 = vst [vmem:[%s301 + $0xd0] sm:$0xff] %v1714
        %1939 = vst [vmem:[%s301 + $0xd8] sm:$0xff] %v1715
        %1940 = vst [vmem:[%s301 + $0xe0] sm:$0xff] %v1716
        %1941 = vst [vmem:[%s301 + $0xe8] sm:$0xff] %v1717
        %1942 = vst [vmem:[%s301 + $0xf0] sm:$0xff] %v1718
        %1943 = vst [vmem:[%s301 + $0xf8] sm:$0xff] %v1719
        %v1944 = vsub.f32 0.0, %v1688
        %v1945 = vsub.f32 0.0, %v1689
        %v1946 = vsub.f32 0.0, %v1690
        %v1947 = vsub.f32 0.0, %v1691
        %v1948 = vsub.f32 0.0, %v1692
        %v1949 = vsub.f32 0.0, %v1693
        %v1950 = vsub.f32 0.0, %v1694
        %v1951 = vsub.f32 0.0, %v1695
        %v1952 = vsub.f32 0.0, %v1696
        %v1953 = vsub.f32 0.0, %v1697
        %v1954 = vsub.f32 0.0, %v1698
        %v1955 = vsub.f32 0.0, %v1699
        %v1956 = vsub.f32 0.0, %v1700
        %v1957 = vsub.f32 0.0, %v1701
        %v1958 = vsub.f32 0.0, %v1702
        %v1959 = vsub.f32 0.0, %v1703
        %v1960 = vsub.f32 0.0, %v1704
        %v1961 = vsub.f32 0.0, %v1705
        %v1962 = vsub.f32 0.0, %v1706
        %v1963 = vsub.f32 0.0, %v1707
        %v1964 = vsub.f32 0.0, %v1708
        %v1965 = vsub.f32 0.0, %v1709
        %v1966 = vsub.f32 0.0, %v1710
        %v1967 = vsub.f32 0.0, %v1711
        %v1968 = vsub.f32 0.0, %v1712
        %v1969 = vsub.f32 0.0, %v1713
        %v1970 = vsub.f32 0.0, %v1714
        %v1971 = vsub.f32 0.0, %v1715
        %v1972 = vsub.f32 0.0, %v1716
        %v1973 = vsub.f32 0.0, %v1717
        %v1974 = vsub.f32 0.0, %v1718
        %v1975 = vsub.f32 0.0, %v1719
        %v1976 = vsub.f32 %v1944, %v1880
        %v1977 = vsub.f32 %v1945, %v1881
        %v1978 = vsub.f32 %v1946, %v1882
        %v1979 = vsub.f32 %v1947, %v1883
        %v1980 = vsub.f32 %v1948, %v1884
        %v1981 = vsub.f32 %v1949, %v1885
        %v1982 = vsub.f32 %v1950, %v1886
        %v1983 = vsub.f32 %v1951, %v1887
        %v1984 = vsub.f32 %v1952, %v1888
        %v1985 = vsub.f32 %v1953, %v1889
        %v1986 = vsub.f32 %v1954, %v1890
        %v1987 = vsub.f32 %v1955, %v1891
        %v1988 = vsub.f32 %v1956, %v1892
        %v1989 = vsub.f32 %v1957, %v1893
        %v1990 = vsub.f32 %v1958, %v1894
        %v1991 = vsub.f32 %v1959, %v1895
        %v1992 = vsub.f32 %v1960, %v1896
        %v1993 = vsub.f32 %v1961, %v1897
        %v1994 = vsub.f32 %v1962, %v1898
        %v1995 = vsub.f32 %v1963, %v1899
        %v1996 = vsub.f32 %v1964, %v1900
        %v1997 = vsub.f32 %v1965, %v1901
        %v1998 = vsub.f32 %v1966, %v1902
        %v1999 = vsub.f32 %v1967, %v1903
        %v2000 = vsub.f32 %v1968, %v1904
        %v2001 = vsub.f32 %v1969, %v1905
        %v2002 = vsub.f32 %v1970, %v1906
        %v2003 = vsub.f32 %v1971, %v1907
        %v2004 = vsub.f32 %v1972, %v1908
        %v2005 = vsub.f32 %v1973, %v1909
        %v2006 = vsub.f32 %v1974, %v1910
        %v2007 = vsub.f32 %v1975, %v1911
        %s2008 = scalar_lea.vmem %s301, 256 [#allocation5]
        %2009 = vst [vmem:[%s2008] sm:$0xff] %v1976
        %2010 = vst [vmem:[%s2008 + $0x8] sm:$0xff] %v1977
        %2011 = vst [vmem:[%s2008 + $0x10] sm:$0xff] %v1978
        %2012 = vst [vmem:[%s2008 + $0x18] sm:$0xff] %v1979
        %2013 = vst [vmem:[%s2008 + $0x20] sm:$0xff] %v1980
        %2014 = vst [vmem:[%s2008 + $0x28] sm:$0xff] %v1981
        %2015 = vst [vmem:[%s2008 + $0x30] sm:$0xff] %v1982
        %2016 = vst [vmem:[%s2008 + $0x38] sm:$0xff] %v1983
        %2017 = vst [vmem:[%s2008 + $0x40] sm:$0xff] %v1984
        %2018 = vst [vmem:[%s2008 + $0x48] sm:$0xff] %v1985
        %2019 = vst [vmem:[%s2008 + $0x50] sm:$0xff] %v1986
        %2020 = vst [vmem:[%s2008 + $0x58] sm:$0xff] %v1987
        %2021 = vst [vmem:[%s2008 + $0x60] sm:$0xff] %v1988
        %2022 = vst [vmem:[%s2008 + $0x68] sm:$0xff] %v1989
        %2023 = vst [vmem:[%s2008 + $0x70] sm:$0xff] %v1990
        %2024 = vst [vmem:[%s2008 + $0x78] sm:$0xff] %v1991
        %2025 = vst [vmem:[%s2008 + $0x80] sm:$0xff] %v1992
        %2026 = vst [vmem:[%s2008 + $0x88] sm:$0xff] %v1993
        %2027 = vst [vmem:[%s2008 + $0x90] sm:$0xff] %v1994
        %2028 = vst [vmem:[%s2008 + $0x98] sm:$0xff] %v1995
        %2029 = vst [vmem:[%s2008 + $0xa0] sm:$0xff] %v1996
        %2030 = vst [vmem:[%s2008 + $0xa8] sm:$0xff] %v1997
        %2031 = vst [vmem:[%s2008 + $0xb0] sm:$0xff] %v1998
        %2032 = vst [vmem:[%s2008 + $0xb8] sm:$0xff] %v1999
        %2033 = vst [vmem:[%s2008 + $0xc0] sm:$0xff] %v2000
        %2034 = vst [vmem:[%s2008 + $0xc8] sm:$0xff] %v2001
        %2035 = vst [vmem:[%s2008 + $0xd0] sm:$0xff] %v2002
        %2036 = vst [vmem:[%s2008 + $0xd8] sm:$0xff] %v2003
        %2037 = vst [vmem:[%s2008 + $0xe0] sm:$0xff] %v2004
        %2038 = vst [vmem:[%s2008 + $0xe8] sm:$0xff] %v2005
        %2039 = vst [vmem:[%s2008 + $0xf0] sm:$0xff] %v2006
        %2040 = vst [vmem:[%s2008 + $0xf8] sm:$0xff] %v2007
        %s2041 = scalar_lea.vmem %s301, 512 [#allocation5]
        %2042 = vst [vmem:[%s2041] sm:$0xff] %v1880
        %2043 = vst [vmem:[%s2041 + $0x8] sm:$0xff] %v1881
        %2044 = vst [vmem:[%s2041 + $0x10] sm:$0xff] %v1882
        %2045 = vst [vmem:[%s2041 + $0x18] sm:$0xff] %v1883
        %2046 = vst [vmem:[%s2041 + $0x20] sm:$0xff] %v1884
        %2047 = vst [vmem:[%s2041 + $0x28] sm:$0xff] %v1885
        %2048 = vst [vmem:[%s2041 + $0x30] sm:$0xff] %v1886
        %2049 = vst [vmem:[%s2041 + $0x38] sm:$0xff] %v1887
        %2050 = vst [vmem:[%s2041 + $0x40] sm:$0xff] %v1888
        %2051 = vst [vmem:[%s2041 + $0x48] sm:$0xff] %v1889
        %2052 = vst [vmem:[%s2041 + $0x50] sm:$0xff] %v1890
        %2053 = vst [vmem:[%s2041 + $0x58] sm:$0xff] %v1891
        %2054 = vst [vmem:[%s2041 + $0x60] sm:$0xff] %v1892
        %2055 = vst [vmem:[%s2041 + $0x68] sm:$0xff] %v1893
        %2056 = vst [vmem:[%s2041 + $0x70] sm:$0xff] %v1894
        %2057 = vst [vmem:[%s2041 + $0x78] sm:$0xff] %v1895
        %2058 = vst [vmem:[%s2041 + $0x80] sm:$0xff] %v1896
        %2059 = vst [vmem:[%s2041 + $0x88] sm:$0xff] %v1897
        %2060 = vst [vmem:[%s2041 + $0x90] sm:$0xff] %v1898
        %2061 = vst [vmem:[%s2041 + $0x98] sm:$0xff] %v1899
        %2062 = vst [vmem:[%s2041 + $0xa0] sm:$0xff] %v1900
        %2063 = vst [vmem:[%s2041 + $0xa8] sm:$0xff] %v1901
        %2064 = vst [vmem:[%s2041 + $0xb0] sm:$0xff] %v1902
        %2065 = vst [vmem:[%s2041 + $0xb8] sm:$0xff] %v1903
        %2066 = vst [vmem:[%s2041 + $0xc0] sm:$0xff] %v1904
        %2067 = vst [vmem:[%s2041 + $0xc8] sm:$0xff] %v1905
        %2068 = vst [vmem:[%s2041 + $0xd0] sm:$0xff] %v1906
        %2069 = vst [vmem:[%s2041 + $0xd8] sm:$0xff] %v1907
        %2070 = vst [vmem:[%s2041 + $0xe0] sm:$0xff] %v1908
        %2071 = vst [vmem:[%s2041 + $0xe8] sm:$0xff] %v1909
        %2072 = vst [vmem:[%s2041 + $0xf0] sm:$0xff] %v1910
        %2073 = vst [vmem:[%s2041 + $0xf8] sm:$0xff] %v1911
        %s2074 = scalar_lea.vmem %s301, 768 [#allocation5]
        %2075 = vst [vmem:[%s2074] sm:$0xff] 0.0
        %2076 = vst [vmem:[%s2074 + $0x8] sm:$0xff] 0.0
        %2077 = vst [vmem:[%s2074 + $0x10] sm:$0xff] 0.0
        %2078 = vst [vmem:[%s2074 + $0x18] sm:$0xff] 0.0
        %2079 = vst [vmem:[%s2074 + $0x20] sm:$0xff] 0.0
        %2080 = vst [vmem:[%s2074 + $0x28] sm:$0xff] 0.0
        %2081 = vst [vmem:[%s2074 + $0x30] sm:$0xff] 0.0
        %2082 = vst [vmem:[%s2074 + $0x38] sm:$0xff] 0.0
        %2083 = vst [vmem:[%s2074 + $0x40] sm:$0xff] 0.0
        %2084 = vst [vmem:[%s2074 + $0x48] sm:$0xff] 0.0
        %2085 = vst [vmem:[%s2074 + $0x50] sm:$0xff] 0.0
        %2086 = vst [vmem:[%s2074 + $0x58] sm:$0xff] 0.0
        %2087 = vst [vmem:[%s2074 + $0x60] sm:$0xff] 0.0
        %2088 = vst [vmem:[%s2074 + $0x68] sm:$0xff] 0.0
        %2089 = vst [vmem:[%s2074 + $0x70] sm:$0xff] 0.0
        %2090 = vst [vmem:[%s2074 + $0x78] sm:$0xff] 0.0
        %2091 = vst [vmem:[%s2074 + $0x80] sm:$0xff] 0.0
        %2092 = vst [vmem:[%s2074 + $0x88] sm:$0xff] 0.0
        %2093 = vst [vmem:[%s2074 + $0x90] sm:$0xff] 0.0
        %2094 = vst [vmem:[%s2074 + $0x98] sm:$0xff] 0.0
        %2095 = vst [vmem:[%s2074 + $0xa0] sm:$0xff] 0.0
        %2096 = vst [vmem:[%s2074 + $0xa8] sm:$0xff] 0.0
        %2097 = vst [vmem:[%s2074 + $0xb0] sm:$0xff] 0.0
        %2098 = vst [vmem:[%s2074 + $0xb8] sm:$0xff] 0.0
        %2099 = vst [vmem:[%s2074 + $0xc0] sm:$0xff] 0.0
        %2100 = vst [vmem:[%s2074 + $0xc8] sm:$0xff] 0.0
        %2101 = vst [vmem:[%s2074 + $0xd0] sm:$0xff] 0.0
        %2102 = vst [vmem:[%s2074 + $0xd8] sm:$0xff] 0.0
        %2103 = vst [vmem:[%s2074 + $0xe0] sm:$0xff] 0.0
        %2104 = vst [vmem:[%s2074 + $0xe8] sm:$0xff] 0.0
        %2105 = vst [vmem:[%s2074 + $0xf0] sm:$0xff] 0.0
        %2106 = vst [vmem:[%s2074 + $0xf8] sm:$0xff] 0.0
        %s2107 = sand.u32 %s150, 1
        %s2108 = scalar_lea.sflag [#allocation4], %s2107
        %s2109 = sand.u32 %s150, 1
        %s2110 = smul.addr %s2109, 1024
        %s2111 = scalar_lea.vmem [#allocation5], %s2110
        // Predicated region
        $region45: #{odefunc_forward.1} parent=39 // pred_check
          %p2112 = pneg %p160
        $region46: #{odefunc_forward.1} parent=39 // pred_check_branch
          %2114 = sbr.rel (%p2112) target = $region48
        $region47: #{odefunc_forward.1} parent=39 // pred_region
          #allocation9 [shape = 'u32[6]{0}', space=smem, size = 0x18, scoped, tag = 'DMA stride descriptor']
          %s2115 = smul.u32 32, %s22
          %s2117 = ssub.s32 16384, 16384
          %2118 = vsyncadd %s2108, %s2117
          %s2119 = smul.addr %s2115, 128
          %s2120 = scalar_lea.hbm %s5, %s2119
          %s2122 = sshll.u32 1, 14
          %s2123 = sxor.u32 4294967295, %s2122
          %s2126 = sshll.u32 7, 18
          %s2127 = sxor.u32 4294967295, %s2126
          %s2128 = sand.u32 0, %s2127
          %s2130 = sor.u32 %s2128, 0
          %s2132 = sshll.u32 3, 24
          %s2133 = sxor.u32 4294967295, %s2132
          %s2134 = sand.u32 %s2130, %s2133
          %s2136 = sor.u32 %s2134, 0
          %s2137 = sshll.u32 %s2111, 4
          %s2138 = int_to_ptr.vmem [resolvable:$true] %s2137
          %2144 = sst [smem:[#allocation9]] 4096
          %s2145 = scalar_lea.smem [#allocation9], 1
          %2146 = sst [smem:[%s2145]] 8192
          %s2147 = scalar_lea.smem [#allocation9], 2
          %2148 = sst [smem:[%s2147]] 32
          %s2149 = scalar_lea.smem [#allocation9], 3
          %2150 = sst [smem:[%s2149]] 128
          %s2151 = scalar_lea.smem [#allocation9], 4
          %2152 = sst [smem:[%s2151]] 128
          %s2153 = scalar_lea.smem [#allocation9], 5
          %2154 = sst [smem:[%s2153]] 8
          %2156 = dma.general %s2138, 16384, %s2120, %s2108, [#allocation8], [#allocation9], %s2136, 0
        $region48: #{odefunc_forward.1} parent=39 // pred_fallthru
          _
      $region40: #{odefunc_forward.1} parent=5 // pred_fallthru
        _
      %p2157 = scmp.le.s32.totalorder 2, %s17
      // Predicated region
      $region49: #{odefunc_forward.1} parent=5 // pred_check
        %p2158 = pneg %p2157
      $region50: #{odefunc_forward.1} parent=5 // pred_check_branch
        %2160 = sbr.rel (%p2158) target = $region52
      $region51: #{odefunc_forward.1} parent=5 // pred_region
        %s2161 = ssub.s32 %s17, 2
        // Predicated region
        $region53: #{odefunc_forward.1} parent=51 // pred_check
          %p2162 = pneg %p166
        $region54: #{odefunc_forward.1} parent=51 // pred_check_branch
          %2164 = sbr.rel (%p2162) target = $region56
        $region55: #{odefunc_forward.1} parent=51 // pred_region
          %s2165 = sand.u32 %s151, 1
          %s2166 = scalar_lea.sflag [#allocation4], %s2165
          %s2167 = sand.u32 %s151, 1
          %s2168 = smul.addr %s2167, 1024
          %s2169 = scalar_lea.vmem [#allocation5], %s2168
          %2170 = dma.done %s2166, 16384
        $region56: #{odefunc_forward.1} parent=51 // pred_fallthru
          _
      $region52: #{odefunc_forward.1} parent=5 // pred_fallthru
        _
    $region6: #{odefunc_forward.1} parent=1 // loop_footer
      %s21 = sadd.s32 1, %s17
    $region7: #{odefunc_forward.1} parent=1 // loop_footer_branch
      %16 = sbr.rel target = $region3
    $region8: #{odefunc_forward.1} parent=1 // loop_exit
      _
    %2171 = vsyncpa [#allocation3], 1
    %s2172 = scalar_lea.sflag [#allocation3], 1
    %2173 = vsyncpa %s2172, 1
    %2174 = vsyncpa [#allocation4], 1
    %s2175 = scalar_lea.sflag [#allocation4], 1
    %2176 = vsyncpa %s2175, 1

</llo_original>
